<compile_context>
chip_gen: v6e
topology: v6e:2x2x1
jax: 0.10.0
libtpu: 0.0.40
codegen_flags: <defaults>
</compile_context>

<pallas_src>
import functools
import math

import jax
import jax.numpy as jnp
from jax import lax
from jax.experimental import pallas as pl
from jax.experimental.pallas import tpu as pltpu


def _mha_kernel(scale, compute_dtype, num_heads, q_tile,
                x_ref, wq_ref, bq_ref, wk_ref, bk_ref, wv_ref, bv_ref,
                wo_ref, bo_ref, o_ref, k_cache, v_cache):
    """One (batch, q_tile) grid step: all heads, fused projections + attention."""
    q_idx = pl.program_id(1)
    exact_f32 = jnp.dtype(compute_dtype) == jnp.dtype(jnp.float32)

    # Refresh the per-batch K/V projection caches on the first q tile of each
    # batch.  The q axis is 'arbitrary', so every core runs q==0 before any
    # other q tile of the batches assigned to it (safe under megacore split
    # of the 'parallel' batch axis).
    @pl.when(q_idx == 0)
    def _project_kv():
        x_all = x_ref[0]                                              # (S, D)
        k = jnp.dot(x_all, wk_ref[...],
                    preferred_element_type=jnp.float32) + bk_ref[...]
        v = jnp.dot(x_all, wv_ref[...],
                    preferred_element_type=jnp.float32) + bv_ref[...]
        k_cache[...] = k.astype(compute_dtype)
        v_cache[...] = v.astype(compute_dtype)

    # Q projection for this row tile — full model-width MXU matmul.
    row0 = pl.multiple_of(q_idx * q_tile, q_tile)
    xq = x_ref[0, pl.ds(row0, q_tile), :]                             # (TQ, D)
    q = jnp.dot(xq, wq_ref[...],
                preferred_element_type=jnp.float32) + bq_ref[...]     # (TQ, D) f32
    # Fold 1/sqrt(head_dim) into Q (TQ*D multiplies instead of TQ*S per head).
    q = (q * scale).astype(compute_dtype)

    k = k_cache[...]                                                  # (S, D)
    v = v_cache[...]                                                  # (S, D)
    head_dim = q.shape[-1] // num_heads
    contract_last = (((1,), (1,)), ((), ()))     # contract last axes, no batch dims

    # TODO(synk): the optional `mask` argument of the PyTorch forward is not
    # implemented (mask=None path only).
    # TODO(synk): for very long sequences replace the full (TQ, S) score tile
    # with a flash-style online softmax over K/V tiles.
    attended = []
    for h in range(num_heads):                   # unrolled; one score tile live at a time
        cols = slice(h * head_dim, (h + 1) * head_dim)
        qh, kh, vh = q[:, cols], k[:, cols], v[:, cols]
        # Scores without materialising K^T (no XLU transpose).
        s = lax.dot_general(qh, kh, contract_last,
                            preferred_element_type=jnp.float32)       # (TQ, S)
        m = jnp.max(s, axis=-1, keepdims=True)
        e = jnp.exp(s - m)                                            # f32 softmax stats
        denom = jnp.sum(e, axis=-1, keepdims=True)
        pv = jnp.dot(e.astype(compute_dtype), vh,
                     preferred_element_type=jnp.float32)              # (TQ, hd)
        if exact_f32:
            pv = pv / denom                                   # exact on the f32 path
        else:
            pv = pv * pl.reciprocal(denom, approx=True)       # EUP slot on bf16 path
        attended.append(pv)

    att = jnp.concatenate(attended, axis=-1).astype(compute_dtype)    # (TQ, D)

    # Fused output projection at full width, bias added in f32.
    out = jnp.dot(att, wo_ref[...],
                  preferred_element_type=jnp.float32) + bo_ref[...]
    o_ref[0] = out.astype(o_ref.dtype)


def _vmem_capacity_bytes():
    try:
        return int(pltpu.get_tpu_info().vmem_capacity_bytes)
    except Exception:
        return 64 * 1024 * 1024          # conservative (v7x-sized) fallback


def _estimate_vmem_bytes(seq, dim, q_tile, in_isz, out_isz):
    weights = 4 * dim * dim * in_isz * 2           # resident W blocks (double-buffer alloc)
    biases = 4 * dim * 4 * 2
    x_block = 2 * seq * dim * in_isz               # double-buffered (1, S, D) x block
    kv_cache = 2 * seq * dim * in_isz              # K/V scratch (single-buffered)
    out_block = 2 * q_tile * dim * out_isz
    temps = 3 * q_tile * seq * 4 + 8 * q_tile * dim * 4   # scores/exp + Q/PV/out in f32
    return weights + biases + x_block + kv_cache + out_block + temps


def _q_tile_candidates(seq, cap):
    cands = [t for t in range(8, min(seq, cap) + 1, 8) if seq % t == 0]
    if not cands:
        # TODO(synk): prime-ish S falls back to a single full-sequence tile.
        return [seq]
    return sorted(cands, reverse=True)


def attention_mechanism(x, params, num_heads, *, compute_dtype=jnp.float32,
                        q_tile_cap=None):
    """x: (B, S, D); params: (D, D) weights in x @ W + b layout, (1, D) biases."""
    B, S, D = x.shape
    assert D % num_heads == 0, "dim must be divisible by num_heads"
    head_dim = D // num_heads
    scale = 1.0 / math.sqrt(head_dim)

    vmem_cap = _vmem_capacity_bytes()
    if q_tile_cap is None:
        # Bigger q tiles on 128 MiB chips (v5e/v6e); smaller on v7x's 64 MiB.
        q_tile_cap = 1024 if vmem_cap >= (96 << 20) else 256

    in_isz = jnp.dtype(compute_dtype).itemsize
    out_isz = jnp.dtype(x.dtype).itemsize
    tq = None
    for cand in _q_tile_candidates(S, q_tile_cap):
        tq = cand
        if _estimate_vmem_bytes(S, D, cand, in_isz, out_isz) <= int(0.85 * vmem_cap):
            break
    num_q_tiles = S // tq
    vmem_limit = int(min(vmem_cap,
                         max(2 * _estimate_vmem_bytes(S, D, tq, in_isz, out_isz),
                             32 * 1024 * 1024)))

    # Cast once in the wrapper: halves HBM->VMEM DMA and removes per-step VPU
    # casts on the bf16 path.  Biases stay f32 (added to f32 accumulators).
    xc = x.astype(compute_dtype)
    wq = params["wq"].astype(compute_dtype)
    wk = params["wk"].astype(compute_dtype)
    wv = params["wv"].astype(compute_dtype)
    wo = params["wo"].astype(compute_dtype)
    bq = params["bq"].astype(jnp.float32)
    bk = params["bk"].astype(jnp.float32)
    bv = params["bv"].astype(jnp.float32)
    bo = params["bo"].astype(jnp.float32)

    kernel = functools.partial(_mha_kernel, scale, compute_dtype, num_heads, tq)

    # Constant index_maps -> weights/biases are DMA'd once and stay resident.
    w_spec = pl.BlockSpec((D, D), lambda b, q: (0, 0))
    b_spec = pl.BlockSpec((1, D), lambda b, q: (0, 0))

    # TODO(synk): with B * num_q_tiles == 1 only one TensorCore is used on v7x
    # (the q axis must stay 'arbitrary' so the q==0 K/V-cache refresh is safe).
    return pl.pallas_call(
        kernel,
        out_shape=jax.ShapeDtypeStruct((B, S, D), x.dtype),
        grid_spec=pltpu.PrefetchScalarGridSpec(
            num_scalar_prefetch=0,
            grid=(B, num_q_tiles),
            in_specs=[
                pl.BlockSpec((1, S, D), lambda b, q: (b, 0, 0)),  # x (re-DMA'd per batch only)
                w_spec, b_spec,      # query
                w_spec, b_spec,      # key
                w_spec, b_spec,      # value
                w_spec, b_spec,      # output
            ],
            out_specs=pl.BlockSpec((1, tq, D), lambda b, q: (b, q, 0)),
            scratch_shapes=[
                pltpu.VMEM((S, D), compute_dtype),   # cached K projection (per batch)
                pltpu.VMEM((S, D), compute_dtype),   # cached V projection (per batch)
            ],
        ),
        compiler_params=pltpu.CompilerParams(
            dimension_semantics=("parallel", "arbitrary"),
            vmem_limit_bytes=vmem_limit,
        ),
    )(xc, wq, bq, wk, bk, wv, bv, wo, bo)


def _reference(x, params, num_heads):
    """Pure-JAX reference mirroring the PyTorch forward (mask=None path)."""
    B, S, D = x.shape
    hd = D // num_heads

    def proj(w, b):
        return x @ w + b  # (B, S, D)

    def split_heads(t):
        return t.reshape(B, S, num_heads, hd).transpose(0, 2, 1, 3)  # (B, H, S, hd)

    Q = split_heads(proj(params["wq"], params["bq"]))
    K = split_heads(proj(params["wk"], params["bk"]))
    V = split_heads(proj(params["wv"], params["bv"]))

    scores = jnp.einsum("bhqd,bhkd->bhqk", Q, K) / math.sqrt(hd)
    weights = jax.nn.softmax(scores, axis=-1)
    attended = jnp.einsum("bhqk,bhkd->bhqd", weights, V)
    attended = attended.transpose(0, 2, 1, 3).reshape(B, S, D)
    return attended @ params["wo"] + params["bo"]


if __name__ == "__main__":
    NUM_HEADS = 4
    B, S, D = 2, 8, 32

    key = jax.random.PRNGKey(0)
    kx, kx2, kq, kk, kv, ko, kbq, kbk, kbv, kbo = jax.random.split(key, 10)

    init_scale = 1.0 / math.sqrt(D)
    params = {
        "wq": jax.random.uniform(kq, (D, D), jnp.float32, -init_scale, init_scale),
        "bq": jax.random.uniform(kbq, (1, D), jnp.float32, -init_scale, init_scale),
        "wk": jax.random.uniform(kk, (D, D), jnp.float32, -init_scale, init_scale),
        "bk": jax.random.uniform(kbk, (1, D), jnp.float32, -init_scale, init_scale),
        "wv": jax.random.uniform(kv, (D, D), jnp.float32, -init_scale, init_scale),
        "bv": jax.random.uniform(kbv, (1, D), jnp.float32, -init_scale, init_scale),
        "wo": jax.random.uniform(ko, (D, D), jnp.float32, -init_scale, init_scale),
        "bo": jax.random.uniform(kbo, (1, D), jnp.float32, -init_scale, init_scale),
    }
    x = jax.random.normal(kx, (B, S, D), jnp.float32)
    ref = _reference(x, params, NUM_HEADS)

    # f32 path (exact reciprocal -> tight tolerance).
    out = jax.block_until_ready(attention_mechanism(x, params, NUM_HEADS))
    assert out.shape == (B, S, D)
    assert jnp.allclose(out, ref, atol=1e-4, rtol=1e-4), "f32 kernel mismatch vs reference"

    # bf16 MXU path (f32 accumulation / f32 softmax stats).
    out_bf16 = jax.block_until_ready(
        attention_mechanism(x, params, NUM_HEADS, compute_dtype=jnp.bfloat16))
    assert jnp.allclose(out_bf16, ref, atol=5e-2, rtol=5e-2), "bf16 kernel mismatch vs reference"

    # Multi q-tile path: exercises reuse of the cached K/V projections for q > 0.
    x2 = jax.random.normal(kx2, (B, 16, D), jnp.float32)
    ref2 = _reference(x2, params, NUM_HEADS)
    out2 = jax.block_until_ready(
        attention_mechanism(x2, params, NUM_HEADS, q_tile_cap=8))
    assert jnp.allclose(out2, ref2, atol=1e-4, rtol=1e-4), "multi-tile kernel mismatch vs reference"

    print("KERNEL_OK")
</pallas_src>

<mosaic_0001>
module attributes {stable_mosaic.version = 11 : i64} {
  func.func @_mha_kernel(%arg0: i32, %arg1: i32, %arg2: memref<1x8x32xf32, #tpu.memory_space<vmem>>, %arg3: memref<32x32xf32, #tpu.memory_space<vmem>>, %arg4: memref<1x32xf32, #tpu.memory_space<vmem>>, %arg5: memref<32x32xf32, #tpu.memory_space<vmem>>, %arg6: memref<1x32xf32, #tpu.memory_space<vmem>>, %arg7: memref<32x32xf32, #tpu.memory_space<vmem>>, %arg8: memref<1x32xf32, #tpu.memory_space<vmem>>, %arg9: memref<32x32xf32, #tpu.memory_space<vmem>>, %arg10: memref<1x32xf32, #tpu.memory_space<vmem>>, %arg11: memref<1x8x32xf32, #tpu.memory_space<vmem>>, %arg12: memref<8x32xf32, #tpu.memory_space<vmem>>, %arg13: memref<8x32xf32, #tpu.memory_space<vmem>>) attributes {dimension_semantics = [#tpu.dimension_semantics<parallel>, #tpu.dimension_semantics<arbitrary>], iteration_bounds = array<i64: 2, 1>, scalar_prefetch = 0 : i64, scratch_operands = 2 : i64, tpu.core_type = #tpu.core_type<tc>, window_params = [{transform_indices = @transform_0, window_bounds = array<i64: 1, 8, 32>}, {pipeline_mode = #tpu.pipeline_mode<synchronous>, transform_indices = @transform_1, window_bounds = array<i64: 32, 32>}, {pipeline_mode = #tpu.pipeline_mode<synchronous>, transform_indices = @transform_2, window_bounds = array<i64: 1, 32>}, {pipeline_mode = #tpu.pipeline_mode<synchronous>, transform_indices = @transform_3, window_bounds = array<i64: 32, 32>}, {pipeline_mode = #tpu.pipeline_mode<synchronous>, transform_indices = @transform_4, window_bounds = array<i64: 1, 32>}, {pipeline_mode = #tpu.pipeline_mode<synchronous>, transform_indices = @transform_5, window_bounds = array<i64: 32, 32>}, {pipeline_mode = #tpu.pipeline_mode<synchronous>, transform_indices = @transform_6, window_bounds = array<i64: 1, 32>}, {pipeline_mode = #tpu.pipeline_mode<synchronous>, transform_indices = @transform_7, window_bounds = array<i64: 32, 32>}, {pipeline_mode = #tpu.pipeline_mode<synchronous>, transform_indices = @transform_8, window_bounds = array<i64: 1, 32>}, {transform_indices = @transform_9, window_bounds = array<i64: 1, 8, 32>}]} {
    %c0_i32 = arith.constant 0 : i32
    %0 = arith.cmpi eq, %arg1, %c0_i32 : i32
    %1 = arith.extui %0 : i1 to i32
    %c0_i32_0 = arith.constant 0 : i32
    %2 = arith.cmpi ne, %1, %c0_i32_0 : i32
    scf.if %2 {
      %c0_35 = arith.constant 0 : index
      %c0_36 = arith.constant 0 : index
      %c0_37 = arith.constant 0 : index
      %82 = vector.load %arg2[%c0_35, %c0_36, %c0_37] : memref<1x8x32xf32, #tpu.memory_space<vmem>>, vector<1x8x32xf32>
      %83 = vector.shape_cast %82 : vector<1x8x32xf32> to vector<8x32xf32>
      %c0_38 = arith.constant 0 : index
      %c0_39 = arith.constant 0 : index
      %84 = vector.load %arg5[%c0_38, %c0_39] : memref<32x32xf32, #tpu.memory_space<vmem>>, vector<32x32xf32>
      %cst_40 = arith.constant dense<0.000000e+00> : vector<8x32xf32>
      %85 = tpu.matmul %83, %84, %cst_40 {dimension_numbers = #tpu.dot_dimension_numbers<[1], [0], [0], [1], [0, 0, 1, 1], [], []>} : vector<8x32xf32>, vector<32x32xf32>, vector<8x32xf32> -> vector<8x32xf32>
      %c0_41 = arith.constant 0 : index
      %c0_42 = arith.constant 0 : index
      %86 = vector.load %arg6[%c0_41, %c0_42] : memref<1x32xf32, #tpu.memory_space<vmem>>, vector<1x32xf32>
      %87 = vector.broadcast %86 : vector<1x32xf32> to vector<8x32xf32>
      %88 = arith.addf %85, %87 : vector<8x32xf32>
      %c0_43 = arith.constant 0 : index
      %c0_44 = arith.constant 0 : index
      %89 = vector.load %arg7[%c0_43, %c0_44] : memref<32x32xf32, #tpu.memory_space<vmem>>, vector<32x32xf32>
      %cst_45 = arith.constant dense<0.000000e+00> : vector<8x32xf32>
      %90 = tpu.matmul %83, %89, %cst_45 {dimension_numbers = #tpu.dot_dimension_numbers<[1], [0], [0], [1], [0, 0, 1, 1], [], []>} : vector<8x32xf32>, vector<32x32xf32>, vector<8x32xf32> -> vector<8x32xf32>
      %c0_46 = arith.constant 0 : index
      %c0_47 = arith.constant 0 : index
      %91 = vector.load %arg8[%c0_46, %c0_47] : memref<1x32xf32, #tpu.memory_space<vmem>>, vector<1x32xf32>
      %92 = vector.broadcast %91 : vector<1x32xf32> to vector<8x32xf32>
      %93 = arith.addf %90, %92 : vector<8x32xf32>
      %c0_48 = arith.constant 0 : index
      %c0_49 = arith.constant 0 : index
      %94 = vector.load %arg12[%c0_48, %c0_49] : memref<8x32xf32, #tpu.memory_space<vmem>>, vector<8x32xf32>
      tpu.vector_store %arg12[%c0_48, %c0_49], %88 {strides = array<i32>} : memref<8x32xf32, #tpu.memory_space<vmem>>, vector<8x32xf32>,
      %c0_50 = arith.constant 0 : index
      %c0_51 = arith.constant 0 : index
      %95 = vector.load %arg13[%c0_50, %c0_51] : memref<8x32xf32, #tpu.memory_space<vmem>>, vector<8x32xf32>
      tpu.vector_store %arg13[%c0_50, %c0_51], %93 {strides = array<i32>} : memref<8x32xf32, #tpu.memory_space<vmem>>, vector<8x32xf32>,
    } else {
    }
    %c8_i32 = arith.constant 8 : i32
    %3 = arith.muli %arg1, %c8_i32 : i32
    %4 = tpu.assume_multiple %3, 8 : i32
    %c0 = arith.constant 0 : index
    %5 = arith.index_cast %4 : i32 to index
    %c0_1 = arith.constant 0 : index
    %6 = vector.load %arg2[%c0, %5, %c0_1] : memref<1x8x32xf32, #tpu.memory_space<vmem>>, vector<1x8x32xf32>
    %7 = vector.shape_cast %6 : vector<1x8x32xf32> to vector<8x32xf32>
    %c0_2 = arith.constant 0 : index
    %c0_3 = arith.constant 0 : index
    %8 = vector.load %arg3[%c0_2, %c0_3] : memref<32x32xf32, #tpu.memory_space<vmem>>, vector<32x32xf32>
    %cst = arith.constant dense<0.000000e+00> : vector<8x32xf32>
    %9 = tpu.matmul %7, %8, %cst {dimension_numbers = #tpu.dot_dimension_numbers<[1], [0], [0], [1], [0, 0, 1, 1], [], []>} : vector<8x32xf32>, vector<32x32xf32>, vector<8x32xf32> -> vector<8x32xf32>
    %c0_4 = arith.constant 0 : index
    %c0_5 = arith.constant 0 : index
    %10 = vector.load %arg4[%c0_4, %c0_5] : memref<1x32xf32, #tpu.memory_space<vmem>>, vector<1x32xf32>
    %11 = vector.broadcast %10 : vector<1x32xf32> to vector<8x32xf32>
    %12 = arith.addf %9, %11 : vector<8x32xf32>
    %cst_6 = arith.constant 0.353553385 : f32
    %13 = vector.broadcast %cst_6 : f32 to vector<8x32xf32>
    %14 = arith.mulf %12, %13 : vector<8x32xf32>
    %c0_7 = arith.constant 0 : index
    %c0_8 = arith.constant 0 : index
    %15 = vector.load %arg12[%c0_7, %c0_8] : memref<8x32xf32, #tpu.memory_space<vmem>>, vector<8x32xf32>
    %c0_9 = arith.constant 0 : index
    %c0_10 = arith.constant 0 : index
    %16 = vector.load %arg13[%c0_9, %c0_10] : memref<8x32xf32, #tpu.memory_space<vmem>>, vector<8x32xf32>
    %17 = vector.extract_strided_slice %14 {offsets = [0, 0], sizes = [8, 8], strides = [1, 1]} : vector<8x32xf32> to vector<8x8xf32>
    %18 = vector.extract_strided_slice %15 {offsets = [0, 0], sizes = [8, 8], strides = [1, 1]} : vector<8x32xf32> to vector<8x8xf32>
    %19 = vector.extract_strided_slice %16 {offsets = [0, 0], sizes = [8, 8], strides = [1, 1]} : vector<8x32xf32> to vector<8x8xf32>
    %cst_11 = arith.constant dense<0.000000e+00> : vector<8x8xf32>
    %20 = tpu.matmul %17, %18, %cst_11 {dimension_numbers = #tpu.dot_dimension_numbers<[1], [1], [0], [0], [0, 0, 1, 0], [], []>} : vector<8x8xf32>, vector<8x8xf32>, vector<8x8xf32> -> vector<8x8xf32>
    %cst_12 = arith.constant dense<0xFF800000> : vector<8xf32>
    %21 = vector.multi_reduction <maximumf>, %20, %cst_12 [1] : vector<8x8xf32> to vector<8xf32>
    %22 = vector.shape_cast %21 : vector<8xf32> to vector<8x1xf32>
    %23 = vector.broadcast %22 : vector<8x1xf32> to vector<8x8xf32>
    %24 = arith.subf %20, %23 : vector<8x8xf32>
    %25 = math.exp %24 : vector<8x8xf32>
    %cst_13 = arith.constant dense<0.000000e+00> : vector<8xf32>
    %26 = vector.multi_reduction <add>, %25, %cst_13 [1] : vector<8x8xf32> to vector<8xf32>
    %27 = vector.shape_cast %26 : vector<8xf32> to vector<8x1xf32>
    %cst_14 = arith.constant dense<0.000000e+00> : vector<8x8xf32>
    %28 = tpu.matmul %25, %19, %cst_14 {dimension_numbers = #tpu.dot_dimension_numbers<[1], [0], [0], [1], [0, 0, 1, 1], [], []>} : vector<8x8xf32>, vector<8x8xf32>, vector<8x8xf32> -> vector<8x8xf32>
    %29 = vector.broadcast %27 : vector<8x1xf32> to vector<8x8xf32>
    %30 = arith.divf %28, %29 : vector<8x8xf32>
    %31 = vector.extract_strided_slice %14 {offsets = [0, 8], sizes = [8, 8], strides = [1, 1]} : vector<8x32xf32> to vector<8x8xf32>
    %32 = vector.extract_strided_slice %15 {offsets = [0, 8], sizes = [8, 8], strides = [1, 1]} : vector<8x32xf32> to vector<8x8xf32>
    %33 = vector.extract_strided_slice %16 {offsets = [0, 8], sizes = [8, 8], strides = [1, 1]} : vector<8x32xf32> to vector<8x8xf32>
    %cst_15 = arith.constant dense<0.000000e+00> : vector<8x8xf32>
    %34 = tpu.matmul %31, %32, %cst_15 {dimension_numbers = #tpu.dot_dimension_numbers<[1], [1], [0], [0], [0, 0, 1, 0], [], []>} : vector<8x8xf32>, vector<8x8xf32>, vector<8x8xf32> -> vector<8x8xf32>
    %cst_16 = arith.constant dense<0xFF800000> : vector<8xf32>
    %35 = vector.multi_reduction <maximumf>, %34, %cst_16 [1] : vector<8x8xf32> to vector<8xf32>
    %36 = vector.shape_cast %35 : vector<8xf32> to vector<8x1xf32>
    %37 = vector.broadcast %36 : vector<8x1xf32> to vector<8x8xf32>
    %38 = arith.subf %34, %37 : vector<8x8xf32>
    %39 = math.exp %38 : vector<8x8xf32>
    %cst_17 = arith.constant dense<0.000000e+00> : vector<8xf32>
    %40 = vector.multi_reduction <add>, %39, %cst_17 [1] : vector<8x8xf32> to vector<8xf32>
    %41 = vector.shape_cast %40 : vector<8xf32> to vector<8x1xf32>
    %cst_18 = arith.constant dense<0.000000e+00> : vector<8x8xf32>
    %42 = tpu.matmul %39, %33, %cst_18 {dimension_numbers = #tpu.dot_dimension_numbers<[1], [0], [0], [1], [0, 0, 1, 1], [], []>} : vector<8x8xf32>, vector<8x8xf32>, vector<8x8xf32> -> vector<8x8xf32>
    %43 = vector.broadcast %41 : vector<8x1xf32> to vector<8x8xf32>
    %44 = arith.divf %42, %43 : vector<8x8xf32>
    %45 = vector.extract_strided_slice %14 {offsets = [0, 16], sizes = [8, 8], strides = [1, 1]} : vector<8x32xf32> to vector<8x8xf32>
    %46 = vector.extract_strided_slice %15 {offsets = [0, 16], sizes = [8, 8], strides = [1, 1]} : vector<8x32xf32> to vector<8x8xf32>
    %47 = vector.extract_strided_slice %16 {offsets = [0, 16], sizes = [8, 8], strides = [1, 1]} : vector<8x32xf32> to vector<8x8xf32>
    %cst_19 = arith.constant dense<0.000000e+00> : vector<8x8xf32>
    %48 = tpu.matmul %45, %46, %cst_19 {dimension_numbers = #tpu.dot_dimension_numbers<[1], [1], [0], [0], [0, 0, 1, 0], [], []>} : vector<8x8xf32>, vector<8x8xf32>, vector<8x8xf32> -> vector<8x8xf32>
    %cst_20 = arith.constant dense<0xFF800000> : vector<8xf32>
    %49 = vector.multi_reduction <maximumf>, %48, %cst_20 [1] : vector<8x8xf32> to vector<8xf32>
    %50 = vector.shape_cast %49 : vector<8xf32> to vector<8x1xf32>
    %51 = vector.broadcast %50 : vector<8x1xf32> to vector<8x8xf32>
    %52 = arith.subf %48, %51 : vector<8x8xf32>
    %53 = math.exp %52 : vector<8x8xf32>
    %cst_21 = arith.constant dense<0.000000e+00> : vector<8xf32>
    %54 = vector.multi_reduction <add>, %53, %cst_21 [1] : vector<8x8xf32> to vector<8xf32>
    %55 = vector.shape_cast %54 : vector<8xf32> to vector<8x1xf32>
    %cst_22 = arith.constant dense<0.000000e+00> : vector<8x8xf32>
    %56 = tpu.matmul %53, %47, %cst_22 {dimension_numbers = #tpu.dot_dimension_numbers<[1], [0], [0], [1], [0, 0, 1, 1], [], []>} : vector<8x8xf32>, vector<8x8xf32>, vector<8x8xf32> -> vector<8x8xf32>
    %57 = vector.broadcast %55 : vector<8x1xf32> to vector<8x8xf32>
    %58 = arith.divf %56, %57 : vector<8x8xf32>
    %59 = vector.extract_strided_slice %14 {offsets = [0, 24], sizes = [8, 8], strides = [1, 1]} : vector<8x32xf32> to vector<8x8xf32>
    %60 = vector.extract_strided_slice %15 {offsets = [0, 24], sizes = [8, 8], strides = [1, 1]} : vector<8x32xf32> to vector<8x8xf32>
    %61 = vector.extract_strided_slice %16 {offsets = [0, 24], sizes = [8, 8], strides = [1, 1]} : vector<8x32xf32> to vector<8x8xf32>
    %cst_23 = arith.constant dense<0.000000e+00> : vector<8x8xf32>
    %62 = tpu.matmul %59, %60, %cst_23 {dimension_numbers = #tpu.dot_dimension_numbers<[1], [1], [0], [0], [0, 0, 1, 0], [], []>} : vector<8x8xf32>, vector<8x8xf32>, vector<8x8xf32> -> vector<8x8xf32>
    %cst_24 = arith.constant dense<0xFF800000> : vector<8xf32>
    %63 = vector.multi_reduction <maximumf>, %62, %cst_24 [1] : vector<8x8xf32> to vector<8xf32>
    %64 = vector.shape_cast %63 : vector<8xf32> to vector<8x1xf32>
    %65 = vector.broadcast %64 : vector<8x1xf32> to vector<8x8xf32>
    %66 = arith.subf %62, %65 : vector<8x8xf32>
    %67 = math.exp %66 : vector<8x8xf32>
    %cst_25 = arith.constant dense<0.000000e+00> : vector<8xf32>
    %68 = vector.multi_reduction <add>, %67, %cst_25 [1] : vector<8x8xf32> to vector<8xf32>
    %69 = vector.shape_cast %68 : vector<8xf32> to vector<8x1xf32>
    %cst_26 = arith.constant dense<0.000000e+00> : vector<8x8xf32>
    %70 = tpu.matmul %67, %61, %cst_26 {dimension_numbers = #tpu.dot_dimension_numbers<[1], [0], [0], [1], [0, 0, 1, 1], [], []>} : vector<8x8xf32>, vector<8x8xf32>, vector<8x8xf32> -> vector<8x8xf32>
    %71 = vector.broadcast %69 : vector<8x1xf32> to vector<8x8xf32>
    %72 = arith.divf %70, %71 : vector<8x8xf32>
    %73 = tpu.concatenate %30, %44, %58, %72 in 1 : vector<8x8xf32>, vector<8x8xf32>, vector<8x8xf32>, vector<8x8xf32> -> vector<8x32xf32>
    %c0_27 = arith.constant 0 : index
    %c0_28 = arith.constant 0 : index
    %74 = vector.load %arg9[%c0_27, %c0_28] : memref<32x32xf32, #tpu.memory_space<vmem>>, vector<32x32xf32>
    %cst_29 = arith.constant dense<0.000000e+00> : vector<8x32xf32>
    %75 = tpu.matmul %73, %74, %cst_29 {dimension_numbers = #tpu.dot_dimension_numbers<[1], [0], [0], [1], [0, 0, 1, 1], [], []>} : vector<8x32xf32>, vector<32x32xf32>, vector<8x32xf32> -> vector<8x32xf32>
    %c0_30 = arith.constant 0 : index
    %c0_31 = arith.constant 0 : index
    %76 = vector.load %arg10[%c0_30, %c0_31] : memref<1x32xf32, #tpu.memory_space<vmem>>, vector<1x32xf32>
    %77 = vector.broadcast %76 : vector<1x32xf32> to vector<8x32xf32>
    %78 = arith.addf %75, %77 : vector<8x32xf32>
    %c0_32 = arith.constant 0 : index
    %c0_33 = arith.constant 0 : index
    %c0_34 = arith.constant 0 : index
    %79 = vector.load %arg11[%c0_32, %c0_33, %c0_34] : memref<1x8x32xf32, #tpu.memory_space<vmem>>, vector<1x8x32xf32>
    %80 = vector.shape_cast %79 : vector<1x8x32xf32> to vector<8x32xf32>
    %81 = vector.shape_cast %78 : vector<8x32xf32> to vector<1x8x32xf32>
    tpu.vector_store %arg11[%c0_32, %c0_33, %c0_34], %81 {strides = array<i32>} : memref<1x8x32xf32, #tpu.memory_space<vmem>>, vector<1x8x32xf32>,
    return
  }
  func.func @transform_0(%arg0: i32, %arg1: i32) -> (i32, i32, i32) {
    %c0_i32 = arith.constant 0 : i32
    %c0_i32_0 = arith.constant 0 : i32
    %c0_i32_1 = arith.constant 0 : i32
    return %arg0, %c0_i32, %c0_i32_0 : i32, i32, i32
  }
  func.func @transform_1(%arg0: i32, %arg1: i32) -> (i32, i32) {
    %c0_i32 = arith.constant 0 : i32
    %c0_i32_0 = arith.constant 0 : i32
    %c0_i32_1 = arith.constant 0 : i32
    return %c0_i32, %c0_i32_0 : i32, i32
  }
  func.func @transform_2(%arg0: i32, %arg1: i32) -> (i32, i32) {
    %c0_i32 = arith.constant 0 : i32
    %c0_i32_0 = arith.constant 0 : i32
    %c0_i32_1 = arith.constant 0 : i32
    return %c0_i32, %c0_i32_0 : i32, i32
  }
  func.func @transform_3(%arg0: i32, %arg1: i32) -> (i32, i32) {
    %c0_i32 = arith.constant 0 : i32
    %c0_i32_0 = arith.constant 0 : i32
    %c0_i32_1 = arith.constant 0 : i32
    return %c0_i32, %c0_i32_0 : i32, i32
  }
  func.func @transform_4(%arg0: i32, %arg1: i32) -> (i32, i32) {
    %c0_i32 = arith.constant 0 : i32
    %c0_i32_0 = arith.constant 0 : i32
    %c0_i32_1 = arith.constant 0 : i32
    return %c0_i32, %c0_i32_0 : i32, i32
  }
  func.func @transform_5(%arg0: i32, %arg1: i32) -> (i32, i32) {
    %c0_i32 = arith.constant 0 : i32
    %c0_i32_0 = arith.constant 0 : i32
    %c0_i32_1 = arith.constant 0 : i32
    return %c0_i32, %c0_i32_0 : i32, i32
  }
  func.func @transform_6(%arg0: i32, %arg1: i32) -> (i32, i32) {
    %c0_i32 = arith.constant 0 : i32
    %c0_i32_0 = arith.constant 0 : i32
    %c0_i32_1 = arith.constant 0 : i32
    return %c0_i32, %c0_i32_0 : i32, i32
  }
  func.func @transform_7(%arg0: i32, %arg1: i32) -> (i32, i32) {
    %c0_i32 = arith.constant 0 : i32
    %c0_i32_0 = arith.constant 0 : i32
    %c0_i32_1 = arith.constant 0 : i32
    return %c0_i32, %c0_i32_0 : i32, i32
  }
  func.func @transform_8(%arg0: i32, %arg1: i32) -> (i32, i32) {
    %c0_i32 = arith.constant 0 : i32
    %c0_i32_0 = arith.constant 0 : i32
    %c0_i32_1 = arith.constant 0 : i32
    return %c0_i32, %c0_i32_0 : i32, i32
  }
  func.func @transform_9(%arg0: i32, %arg1: i32) -> (i32, i32, i32) {
    %c0_i32 = arith.constant 0 : i32
    %c0_i32_0 = arith.constant 0 : i32
    return %arg0, %arg1, %c0_i32 : i32, i32, i32
  }
}

</mosaic_0001>

<llo_original>
// kernel: tpu_custom_call.1
$region0: #{tpu_custom_call.1}
  #allocation0 [shape = 'u32[]', space=smem, size = 0x4, offset = 0x4, fixed_abs, tag = 'smem constant byte address 0x4 - core index']
  #allocation1 [shape = 'u32[144,128]{1,0:T(1,128)}', space=vmem, size = 0x12000, scoped, tag = 'internal scratch']
  #allocation2 [shape = 'f32[8,32]{1,0:T(8,128)}', space=vmem, size = 0x1000, scoped, tag = 'scratch operand']
  #allocation3 [shape = 'f32[8,32]{1,0:T(8,128)}', space=vmem, size = 0x1000, scoped, tag = 'scratch operand']
  %s0 = inlined_call_operand.hbm [shape: f32[2,8,32], index: 0, kind: input, shape index: {}]
  %s1 = inlined_call_operand.hbm [shape: f32[32,32], index: 1, kind: input, shape index: {}]
  %s2 = inlined_call_operand.vmem [shape: f32[1,32], index: 2, kind: input, shape index: {}]
  %s3 = inlined_call_operand.hbm [shape: f32[32,32], index: 3, kind: input, shape index: {}]
  %s4 = inlined_call_operand.vmem [shape: f32[1,32], index: 4, kind: input, shape index: {}]
  %s5 = inlined_call_operand.hbm [shape: f32[32,32], index: 5, kind: input, shape index: {}]
  %s6 = inlined_call_operand.vmem [shape: f32[1,32], index: 6, kind: input, shape index: {}]
  %s7 = inlined_call_operand.hbm [shape: f32[32,32], index: 7, kind: input, shape index: {}]
  %s8 = inlined_call_operand.vmem [shape: f32[1,32], index: 8, kind: input, shape index: {}]
  %s9 = inlined_call_operand.hbm [shape: f32[2,8,32], index: 9, kind: output, shape index: {}]
  %s10 = sld [smem:[#allocation0]]
  $region93: #{tpu_custom_call.1} parent=0
    _
  %s12 = ssub.s32 1, %s10
  %s13 = scalar_select 0, %s12, %s10
  $region1: #{tpu_custom_call.1} parent=0
    #allocation4 [shape = 'u8[8192]{0}', space=vmem, size = 0x2000, scoped, tag = 'input window, operand 0']
    #allocation5 [shape = 's32[2]{0}', space=sflag, size = 0x8, scoped, tag = 'scoped memory for tpu_custom_call.1']
    #allocation6 [shape = 's32[2]{0}', space=sflag, size = 0x8, scoped, tag = 'scoped memory for tpu_custom_call.1']
    #allocation7 [shape = 'u8[16384]{0}', space=vmem, size = 0x4000, scoped, tag = 'input window, operand 1, single buffered']
    #allocation8 [shape = 's32[1]{0}', space=sflag, size = 0x4, scoped, tag = 'scoped memory for tpu_custom_call.1']
    #allocation9 [shape = 'u8[16384]{0}', space=vmem, size = 0x4000, scoped, tag = 'input window, operand 3, single buffered']
    #allocation10 [shape = 'u8[16384]{0}', space=vmem, size = 0x4000, scoped, tag = 'input window, operand 5, single buffered']
    #allocation11 [shape = 's32[1]{0}', space=sflag, size = 0x4, scoped, tag = 'scoped memory for tpu_custom_call.1']
    #allocation12 [shape = 'u8[16384]{0}', space=vmem, size = 0x4000, scoped, tag = 'input window, operand 7, single buffered']
    #allocation13 [shape = 'u8[8192]{0}', space=vmem, size = 0x2000, scoped, tag = 'output window, operand 0']
    %14 = vsyncpa [#allocation5], 0
    %s15 = scalar_lea.sflag [#allocation5], 1
    %16 = vsyncpa %s15, 0
    %17 = vsyncpa [#allocation8], 0
    %18 = vsyncpa [#allocation11], 0
    %19 = vsyncpa [#allocation6], 0
    %s20 = scalar_lea.sflag [#allocation6], 1
    %21 = vsyncpa %s20, 0
    loop: start=0, step=1, limit=4
    $region2: #{tpu_custom_call.1} parent=1 // loop_pre_header
      _
    $region3: #{tpu_custom_call.1} parent=1 // loop_header
      %s23 = sphi 0, %s27
      %p24 = scmp.ge.s32.totalorder %s23, 4
      %s30 = sphi 0, %s42
      %s31 = sphi 0, %s38
      %s32 = sphi 0, %s30
      %s33 = sphi 0, %s31
      %s34 = sphi 0, %s32
      %s35 = sphi 0, %s33
      %s45 = sphi 0, %s47
      %s48 = sphi 0, %s45
      %s49 = sphi 0, %s48
      %s65 = sphi 0, %s49
      %s69 = sphi 0, %s69
      %s71 = sphi 0, %s69
      %s72 = sphi 0, %s71
      %s86 = sphi 0, %s72
      %s90 = sphi 0, %s90
      %s92 = sphi 0, %s90
      %s93 = sphi 0, %s92
      %s107 = sphi 0, %s93
      %s111 = sphi 0, %s111
      %s113 = sphi 0, %s111
      %s114 = sphi 0, %s113
      %s128 = sphi 0, %s114
      %s132 = sphi 0, %s132
      %s134 = sphi 0, %s132
      %s135 = sphi 0, %s134
      %s149 = sphi 0, %s135
      %s153 = sphi 0, %s153
      %s155 = sphi 0, %s153
      %s156 = sphi 0, %s155
      %s170 = sphi 0, %s156
      %s174 = sphi 0, %s174
      %s176 = sphi 0, %s174
      %s177 = sphi 0, %s176
      %s191 = sphi 0, %s177
      %s195 = sphi 0, %s195
      %s197 = sphi 0, %s195
      %s198 = sphi 0, %s197
      %s212 = sphi 0, %s198
      %s216 = sphi 0, %s216
      %s218 = sphi 0, %s216
      %s219 = sphi 0, %s218
      %s233 = sphi 0, %s219
      %s241 = sphi 0, %s243
      %s244 = sphi 0, %s241
      %s245 = sphi 0, %s244
      %s261 = sphi 0, %s245
    $region4: #{tpu_custom_call.1} parent=1 // loop_header_branch
      %26 = sbr.rel (%p24) target = $region8
    $region5: #{tpu_custom_call.1} parent=1 // loop_body
      %s28 = ssub.s32 %s23, 1
      %s29 = ssub.s32 %s23, 2
      %s36 = sadd.s32 1, %s31
      %p37 = scmp.ge.s32.totalorder %s36, 1
      %s38 = scalar_select %p37, 0, %s36
      %s39 = sadd.s32 1, %s30
      %s40 = scalar_select %p37, %s39, %s30
      %p41 = scmp.ge.s32.totalorder %s40, 2
      %s42 = scalar_select %p41, 0, %s40
      %s43 = ssub.s32 %s30, %s42
      %p44 = scmp.eq.s32.totalorder %s43, 0
      %s46 = sadd.s32 %s45, 1
      %s47 = scalar_select %p44, %s45, %s46
      %p50 = pneg %p44
      %p51 = scmp.eq.s32.totalorder %s23, 1
      %p52 = por %p50, %p51
      %p53 = scmp.ne.s32.totalorder %s45, %s48
      %p54 = scmp.eq.s32.totalorder %s23, 0
      %p55 = por %p53, %p54
      %p56 = scmp.ne.s32.totalorder %s45, %s48
      %p57 = scmp.eq.s32.totalorder %s28, 1
      %p58 = por %p56, %p57
      %p59 = scmp.ne.s32.totalorder %s48, %s49
      %p60 = scmp.eq.s32.totalorder %s28, 0
      %p61 = por %p59, %p60
      %p62 = scmp.ne.s32.totalorder %s48, %s49
      %p63 = scmp.eq.s32.totalorder %s29, 1
      %p64 = por %p62, %p63
      %p66 = scmp.ne.s32.totalorder %s49, %s65
      %p67 = scmp.eq.s32.totalorder %s29, 0
      %p68 = por %p66, %p67
      %s70 = sadd.s32 %s69, 1
      %p73 = scmp.eq.s32.totalorder %s23, 1
      %p74 = scmp.ne.s32.totalorder %s69, %s71
      %p75 = scmp.eq.s32.totalorder %s23, 0
      %p76 = por %p74, %p75
      %p77 = scmp.ne.s32.totalorder %s69, %s71
      %p78 = scmp.eq.s32.totalorder %s28, 1
      %p79 = por %p77, %p78
      %p80 = scmp.ne.s32.totalorder %s71, %s72
      %p81 = scmp.eq.s32.totalorder %s28, 0
      %p82 = por %p80, %p81
      %p83 = scmp.ne.s32.totalorder %s71, %s72
      %p84 = scmp.eq.s32.totalorder %s29, 1
      %p85 = por %p83, %p84
      %p87 = scmp.ne.s32.totalorder %s72, %s86
      %p88 = scmp.eq.s32.totalorder %s29, 0
      %p89 = por %p87, %p88
      %s91 = sadd.s32 %s90, 1
      %p94 = scmp.eq.s32.totalorder %s23, 1
      %p95 = scmp.ne.s32.totalorder %s90, %s92
      %p96 = scmp.eq.s32.totalorder %s23, 0
      %p97 = por %p95, %p96
      %p98 = scmp.ne.s32.totalorder %s90, %s92
      %p99 = scmp.eq.s32.totalorder %s28, 1
      %p100 = por %p98, %p99
      %p101 = scmp.ne.s32.totalorder %s92, %s93
      %p102 = scmp.eq.s32.totalorder %s28, 0
      %p103 = por %p101, %p102
      %p104 = scmp.ne.s32.totalorder %s92, %s93
      %p105 = scmp.eq.s32.totalorder %s29, 1
      %p106 = por %p104, %p105
      %p108 = scmp.ne.s32.totalorder %s93, %s107
      %p109 = scmp.eq.s32.totalorder %s29, 0
      %p110 = por %p108, %p109
      %s112 = sadd.s32 %s111, 1
      %p115 = scmp.eq.s32.totalorder %s23, 1
      %p116 = scmp.ne.s32.totalorder %s111, %s113
      %p117 = scmp.eq.s32.totalorder %s23, 0
      %p118 = por %p116, %p117
      %p119 = scmp.ne.s32.totalorder %s111, %s113
      %p120 = scmp.eq.s32.totalorder %s28, 1
      %p121 = por %p119, %p120
      %p122 = scmp.ne.s32.totalorder %s113, %s114
      %p123 = scmp.eq.s32.totalorder %s28, 0
      %p124 = por %p122, %p123
      %p125 = scmp.ne.s32.totalorder %s113, %s114
      %p126 = scmp.eq.s32.totalorder %s29, 1
      %p127 = por %p125, %p126
      %p129 = scmp.ne.s32.totalorder %s114, %s128
      %p130 = scmp.eq.s32.totalorder %s29, 0
      %p131 = por %p129, %p130
      %s133 = sadd.s32 %s132, 1
      %p136 = scmp.eq.s32.totalorder %s23, 1
      %p137 = scmp.ne.s32.totalorder %s132, %s134
      %p138 = scmp.eq.s32.totalorder %s23, 0
      %p139 = por %p137, %p138
      %p140 = scmp.ne.s32.totalorder %s132, %s134
      %p141 = scmp.eq.s32.totalorder %s28, 1
      %p142 = por %p140, %p141
      %p143 = scmp.ne.s32.totalorder %s134, %s135
      %p144 = scmp.eq.s32.totalorder %s28, 0
      %p145 = por %p143, %p144
      %p146 = scmp.ne.s32.totalorder %s134, %s135
      %p147 = scmp.eq.s32.totalorder %s29, 1
      %p148 = por %p146, %p147
      %p150 = scmp.ne.s32.totalorder %s135, %s149
      %p151 = scmp.eq.s32.totalorder %s29, 0
      %p152 = por %p150, %p151
      %s154 = sadd.s32 %s153, 1
      %p157 = scmp.eq.s32.totalorder %s23, 1
      %p158 = scmp.ne.s32.totalorder %s153, %s155
      %p159 = scmp.eq.s32.totalorder %s23, 0
      %p160 = por %p158, %p159
      %p161 = scmp.ne.s32.totalorder %s153, %s155
      %p162 = scmp.eq.s32.totalorder %s28, 1
      %p163 = por %p161, %p162
      %p164 = scmp.ne.s32.totalorder %s155, %s156
      %p165 = scmp.eq.s32.totalorder %s28, 0
      %p166 = por %p164, %p165
      %p167 = scmp.ne.s32.totalorder %s155, %s156
      %p168 = scmp.eq.s32.totalorder %s29, 1
      %p169 = por %p167, %p168
      %p171 = scmp.ne.s32.totalorder %s156, %s170
      %p172 = scmp.eq.s32.totalorder %s29, 0
      %p173 = por %p171, %p172
      %s175 = sadd.s32 %s174, 1
      %p178 = scmp.eq.s32.totalorder %s23, 1
      %p179 = scmp.ne.s32.totalorder %s174, %s176
      %p180 = scmp.eq.s32.totalorder %s23, 0
      %p181 = por %p179, %p180
      %p182 = scmp.ne.s32.totalorder %s174, %s176
      %p183 = scmp.eq.s32.totalorder %s28, 1
      %p184 = por %p182, %p183
      %p185 = scmp.ne.s32.totalorder %s176, %s177
      %p186 = scmp.eq.s32.totalorder %s28, 0
      %p187 = por %p185, %p186
      %p188 = scmp.ne.s32.totalorder %s176, %s177
      %p189 = scmp.eq.s32.totalorder %s29, 1
      %p190 = por %p188, %p189
      %p192 = scmp.ne.s32.totalorder %s177, %s191
      %p193 = scmp.eq.s32.totalorder %s29, 0
      %p194 = por %p192, %p193
      %s196 = sadd.s32 %s195, 1
      %p199 = scmp.eq.s32.totalorder %s23, 1
      %p200 = scmp.ne.s32.totalorder %s195, %s197
      %p201 = scmp.eq.s32.totalorder %s23, 0
      %p202 = por %p200, %p201
      %p203 = scmp.ne.s32.totalorder %s195, %s197
      %p204 = scmp.eq.s32.totalorder %s28, 1
      %p205 = por %p203, %p204
      %p206 = scmp.ne.s32.totalorder %s197, %s198
      %p207 = scmp.eq.s32.totalorder %s28, 0
      %p208 = por %p206, %p207
      %p209 = scmp.ne.s32.totalorder %s197, %s198
      %p210 = scmp.eq.s32.totalorder %s29, 1
      %p211 = por %p209, %p210
      %p213 = scmp.ne.s32.totalorder %s198, %s212
      %p214 = scmp.eq.s32.totalorder %s29, 0
      %p215 = por %p213, %p214
      %s217 = sadd.s32 %s216, 1
      %p220 = scmp.eq.s32.totalorder %s23, 1
      %p221 = scmp.ne.s32.totalorder %s216, %s218
      %p222 = scmp.eq.s32.totalorder %s23, 0
      %p223 = por %p221, %p222
      %p224 = scmp.ne.s32.totalorder %s216, %s218
      %p225 = scmp.eq.s32.totalorder %s28, 1
      %p226 = por %p224, %p225
      %p227 = scmp.ne.s32.totalorder %s218, %s219
      %p228 = scmp.eq.s32.totalorder %s28, 0
      %p229 = por %p227, %p228
      %p230 = scmp.ne.s32.totalorder %s218, %s219
      %p231 = scmp.eq.s32.totalorder %s29, 1
      %p232 = por %p230, %p231
      %p234 = scmp.ne.s32.totalorder %s219, %s233
      %p235 = scmp.eq.s32.totalorder %s29, 0
      %p236 = por %p234, %p235
      %s237 = ssub.s32 %s30, %s42
      %s238 = ssub.s32 %s31, %s38
      %s239 = sor.u32 %s237, %s238
      %p240 = scmp.eq.s32.totalorder %s239, 0
      %s242 = sadd.s32 %s241, 1
      %s243 = scalar_select %p240, %s241, %s242
      %p246 = pneg %p240
      %p247 = scmp.eq.s32.totalorder %s23, 1
      %p248 = por %p246, %p247
      %p249 = scmp.ne.s32.totalorder %s241, %s244
      %p250 = scmp.eq.s32.totalorder %s23, 0
      %p251 = por %p249, %p250
      %p252 = scmp.ne.s32.totalorder %s241, %s244
      %p253 = scmp.eq.s32.totalorder %s28, 1
      %p254 = por %p252, %p253
      %p255 = scmp.ne.s32.totalorder %s244, %s245
      %p256 = scmp.eq.s32.totalorder %s28, 0
      %p257 = por %p255, %p256
      %p258 = scmp.ne.s32.totalorder %s244, %s245
      %p259 = scmp.eq.s32.totalorder %s29, 1
      %p260 = por %p258, %p259
      %p262 = scmp.ne.s32.totalorder %s245, %s261
      %p263 = scmp.eq.s32.totalorder %s29, 0
      %p264 = por %p262, %p263
      %p265 = scmp.le.s32.totalorder 1, %s23
      %p266 = scmp.lt.s32.totalorder %s23, 3
      %p267 = pnand %p265, %p266
      %p268 = pneg %p267
      // Predicated region
      $region9: #{tpu_custom_call.1} parent=5 // pred_check
        _
      $region10: #{tpu_custom_call.1} parent=5 // pred_check_branch
        %270 = sbr.rel (%p267) target = $region12
      $region11: #{tpu_custom_call.1} parent=5 // pred_region
        %s271 = ssub.s32 %s23, 1
        // Predicated region
        $region13: #{tpu_custom_call.1} parent=11 // pred_check
          %p272 = pneg %p82
        $region14: #{tpu_custom_call.1} parent=11 // pred_check_branch
          %274 = sbr.rel (%p272) target = $region16
        $region15: #{tpu_custom_call.1} parent=11 // pred_region
          %s276 = ssub.s32 512, 512
          %277 = vsyncadd [#allocation8], %s276
          %s278 = sshll.u32 [#allocation7], 4
          %s279 = int_to_ptr.vmem [resolvable:$true] %s278
          %284 = dma.hbm_to_vmem [thread:$0]  %s1, 512, %s279, [#allocation8], 128, 128, 8
        $region16: #{tpu_custom_call.1} parent=11 // pred_fallthru
          _
        // Predicated region
        $region17: #{tpu_custom_call.1} parent=11 // pred_check
          %p285 = pneg %p103
        $region18: #{tpu_custom_call.1} parent=11 // pred_check_branch
          %287 = sbr.rel (%p285) target = $region20
        $region19: #{tpu_custom_call.1} parent=11 // pred_region
          _
        $region20: #{tpu_custom_call.1} parent=11 // pred_fallthru
          _
        // Predicated region
        $region21: #{tpu_custom_call.1} parent=11 // pred_check
          %p288 = pneg %p124
        $region22: #{tpu_custom_call.1} parent=11 // pred_check_branch
          %290 = sbr.rel (%p288) target = $region24
        $region23: #{tpu_custom_call.1} parent=11 // pred_region
          %s292 = ssub.s32 512, 512
          %293 = vsyncadd [#allocation8], %s292
          %s294 = sshll.u32 [#allocation9], 4
          %s295 = int_to_ptr.vmem [resolvable:$true] %s294
          %300 = dma.hbm_to_vmem [thread:$0]  %s3, 512, %s295, [#allocation8], 128, 128, 8
        $region24: #{tpu_custom_call.1} parent=11 // pred_fallthru
          _
        // Predicated region
        $region25: #{tpu_custom_call.1} parent=11 // pred_check
          %p301 = pneg %p145
        $region26: #{tpu_custom_call.1} parent=11 // pred_check_branch
          %303 = sbr.rel (%p301) target = $region28
        $region27: #{tpu_custom_call.1} parent=11 // pred_region
          _
        $region28: #{tpu_custom_call.1} parent=11 // pred_fallthru
          _
        // Predicated region
        $region29: #{tpu_custom_call.1} parent=11 // pred_check
          %p304 = pneg %p166
        $region30: #{tpu_custom_call.1} parent=11 // pred_check_branch
          %306 = sbr.rel (%p304) target = $region32
        $region31: #{tpu_custom_call.1} parent=11 // pred_region
          %s308 = ssub.s32 512, 512
          %309 = vsyncadd [#allocation11], %s308
          %s310 = sshll.u32 [#allocation10], 4
          %s311 = int_to_ptr.vmem [resolvable:$true] %s310
          %316 = dma.hbm_to_vmem [thread:$0]  %s5, 512, %s311, [#allocation11], 128, 128, 8
        $region32: #{tpu_custom_call.1} parent=11 // pred_fallthru
          _
        // Predicated region
        $region33: #{tpu_custom_call.1} parent=11 // pred_check
          %p317 = pneg %p187
        $region34: #{tpu_custom_call.1} parent=11 // pred_check_branch
          %319 = sbr.rel (%p317) target = $region36
        $region35: #{tpu_custom_call.1} parent=11 // pred_region
          _
        $region36: #{tpu_custom_call.1} parent=11 // pred_fallthru
          _
        // Predicated region
        $region37: #{tpu_custom_call.1} parent=11 // pred_check
          %p320 = pneg %p208
        $region38: #{tpu_custom_call.1} parent=11 // pred_check_branch
          %322 = sbr.rel (%p320) target = $region40
        $region39: #{tpu_custom_call.1} parent=11 // pred_region
          %s324 = ssub.s32 512, 512
          %325 = vsyncadd [#allocation11], %s324
          %s326 = sshll.u32 [#allocation12], 4
          %s327 = int_to_ptr.vmem [resolvable:$true] %s326
          %332 = dma.hbm_to_vmem [thread:$0]  %s7, 512, %s327, [#allocation11], 128, 128, 8
        $region40: #{tpu_custom_call.1} parent=11 // pred_fallthru
          _
        // Predicated region
        $region41: #{tpu_custom_call.1} parent=11 // pred_check
          %p333 = pneg %p229
        $region42: #{tpu_custom_call.1} parent=11 // pred_check_branch
          %335 = sbr.rel (%p333) target = $region44
        $region43: #{tpu_custom_call.1} parent=11 // pred_region
          _
        $region44: #{tpu_custom_call.1} parent=11 // pred_fallthru
          _
      $region12: #{tpu_custom_call.1} parent=5 // pred_fallthru
        _
      %p336 = scmp.lt.s32.totalorder %s23, 2
      // Predicated region
      $region45: #{tpu_custom_call.1} parent=5 // pred_check
        %p337 = pneg %p336
      $region46: #{tpu_custom_call.1} parent=5 // pred_check_branch
        %339 = sbr.rel (%p337) target = $region48
      $region47: #{tpu_custom_call.1} parent=5 // pred_region
        // Predicated region
        $region49: #{tpu_custom_call.1} parent=47 // pred_check
          %p340 = pneg %p55
        $region50: #{tpu_custom_call.1} parent=47 // pred_check_branch
          %342 = sbr.rel (%p340) target = $region52
        $region51: #{tpu_custom_call.1} parent=47 // pred_region
          %s343 = sand.u32 %s45, 1
          %s344 = scalar_lea.sflag [#allocation5], %s343
          %s345 = sand.u32 %s45, 1
          %s346 = smul.addr %s345, 8
          %s347 = scalar_lea.vmem [#allocation4], %s346
          %s349 = ssub.s32 128, 128
          %350 = vsyncadd %s344, %s349
          %s351 = smul.addr %s30, 128
          %s352 = scalar_lea.hbm %s0, %s351
          %s354 = sshll.u32 %s347, 4
          %s355 = int_to_ptr.vmem [resolvable:$true] %s354
          %357 = dma.hbm_to_vmem [thread:$0]  %s352, 128, %s355, %s344
        $region52: #{tpu_custom_call.1} parent=47 // pred_fallthru
          _
      $region48: #{tpu_custom_call.1} parent=5 // pred_fallthru
        _
      %p358 = scmp.le.s32.totalorder 1, %s23
      %p359 = scmp.lt.s32.totalorder %s23, 3
      %p360 = pnand %p358, %p359
      %p361 = pneg %p360
      // Predicated region
      $region53: #{tpu_custom_call.1} parent=5 // pred_check
        _
      $region54: #{tpu_custom_call.1} parent=5 // pred_check_branch
        %363 = sbr.rel (%p360) target = $region56
      $region55: #{tpu_custom_call.1} parent=5 // pred_region
        %s364 = ssub.s32 %s23, 1
        %s365 = sand.u32 %s48, 1
        %s366 = scalar_lea.sflag [#allocation5], %s365
        %s367 = sand.u32 %s48, 1
        %s368 = smul.addr %s367, 8
        %s369 = scalar_lea.vmem [#allocation4], %s368
        // Predicated region
        $region57: #{tpu_custom_call.1} parent=55 // pred_check
          %p370 = pneg %p61
        $region58: #{tpu_custom_call.1} parent=55 // pred_check_branch
          %372 = sbr.rel (%p370) target = $region60
        $region59: #{tpu_custom_call.1} parent=55 // pred_region
          %373 = dma.done %s366, 128
        $region60: #{tpu_custom_call.1} parent=55 // pred_fallthru
          _
        // Predicated region
        $region61: #{tpu_custom_call.1} parent=55 // pred_check
          %p374 = pneg %p82
        $region62: #{tpu_custom_call.1} parent=55 // pred_check_branch
          %376 = sbr.rel (%p374) target = $region64
        $region63: #{tpu_custom_call.1} parent=55 // pred_region
          %377 = dma.done [#allocation8], 512
        $region64: #{tpu_custom_call.1} parent=55 // pred_fallthru
          _
        // Predicated region
        $region65: #{tpu_custom_call.1} parent=55 // pred_check
          %p378 = pneg %p124
        $region66: #{tpu_custom_call.1} parent=55 // pred_check_branch
          %380 = sbr.rel (%p378) target = $region68
        $region67: #{tpu_custom_call.1} parent=55 // pred_region
          %381 = dma.done [#allocation8], 512
        $region68: #{tpu_custom_call.1} parent=55 // pred_fallthru
          _
        // Predicated region
        $region69: #{tpu_custom_call.1} parent=55 // pred_check
          %p382 = pneg %p166
        $region70: #{tpu_custom_call.1} parent=55 // pred_check_branch
          %384 = sbr.rel (%p382) target = $region72
        $region71: #{tpu_custom_call.1} parent=55 // pred_region
          %385 = dma.done [#allocation11], 512
        $region72: #{tpu_custom_call.1} parent=55 // pred_fallthru
          _
        // Predicated region
        $region73: #{tpu_custom_call.1} parent=55 // pred_check
          %p386 = pneg %p208
        $region74: #{tpu_custom_call.1} parent=55 // pred_check_branch
          %388 = sbr.rel (%p386) target = $region76
        $region75: #{tpu_custom_call.1} parent=55 // pred_region
          %389 = dma.done [#allocation11], 512
        $region76: #{tpu_custom_call.1} parent=55 // pred_fallthru
          _
        %s390 = sand.u32 %s48, 1
        %s391 = scalar_lea.sflag [#allocation5], %s390
        %s392 = sand.u32 %s48, 1
        %s393 = smul.addr %s392, 8
        %s394 = scalar_lea.vmem [#allocation4], %s393
        %p395 = pneg %p61
        %p396 = pneg %p58
        %p397 = pneg %p82
        %p398 = pneg %p79
        %p399 = pneg %p103
        %p400 = pneg %p100
        %p401 = pneg %p124
        %p402 = pneg %p121
        %p403 = pneg %p145
        %p404 = pneg %p142
        %p405 = pneg %p166
        %p406 = pneg %p163
        %p407 = pneg %p187
        %p408 = pneg %p184
        %p409 = pneg %p208
        %p410 = pneg %p205
        %p411 = pneg %p229
        %p412 = pneg %p226
        %p413 = pneg %p257
        %p414 = pneg %p254
        %s415 = sand.u32 %s244, 1
        %s416 = scalar_lea.sflag [#allocation6], %s415
        %s417 = sand.u32 %s244, 1
        %s418 = smul.addr %s417, 8
        %s419 = scalar_lea.vmem [#allocation13], %s418
        %p420 = scmp.eq.s32.totalorder %s33, 0
        // Predicated region
        $region77: #{tpu_custom_call.1} parent=55 // pred_check
          %p421 = pneg %p420
        $region78: #{tpu_custom_call.1} parent=55 // pred_check_branch
          %423 = sbr.rel (%p421) target = $region80
        $region79: #{tpu_custom_call.1} parent=55 // pred_region
          %v424 = vld [vmem:[%s369] sm:$0xff]
          %v425 = vld [vmem:[#allocation9] sm:$0xff]
          %v426 = vld [vmem:[#allocation9 + $0x8] sm:$0xff]
          %v427 = vld [vmem:[#allocation9 + $0x10] sm:$0xff]
          %v428 = vld [vmem:[#allocation9 + $0x18] sm:$0xff]
          %v429 = vld [vmem:[%s4] sm:$0x1]
          %v431 = vlaneseq
          %v432 = vshrl.u32 %v431, 7
          %v433 = vsub.s32 0, %v432
          %v434 = vrot.slane %v429, %v433
          %vm436 = vcmask 261120
          %v438 = vsel %vm436, %v424, 0
          %440 = vmatprep.subr.mxu0 0.0
          %441 = vmatpush1.msra.mxu0 0.0
          %442 = vmatprep.subr.mxu0 0.0
          %443 = vmatpush1.msra.mxu0 0.0
          %444 = vmatprep.subr.mxu0 0.0
          %445 = vmatpush1.msra.mxu0 0.0
          %446 = vmatprep.subr.mxu0 0.0
          %447 = vmatpush1.msra.mxu0 0.0
          %448 = vmatprep.subr.mxu0 0.0
          %449 = vmatpush1.msra.mxu0 0.0
          %450 = vmatprep.subr.mxu0 0.0
          %451 = vmatpush1.msra.mxu0 0.0
          %452 = vmatprep.subr.mxu0 0.0
          %453 = vmatpush1.msra.mxu0 0.0
          %454 = vmatprep.subr.mxu0 0.0
          %455 = vmatpush1.msra.mxu0 0.0
          %456 = vmatprep.subr.mxu0 0.0
          %457 = vmatpush1.msra.mxu0 0.0
          %458 = vmatprep.subr.mxu0 0.0
          %459 = vmatpush1.msra.mxu0 0.0
          %460 = vmatprep.subr.mxu0 0.0
          %461 = vmatpush1.msra.mxu0 0.0
          %462 = vmatprep.subr.mxu0 0.0
          %463 = vmatpush1.msra.mxu0 0.0
          %464 = vmatprep.subr.mxu0 0.0
          %465 = vmatpush1.msra.mxu0 %v428
          %466 = vmatprep.subr.mxu0 0.0
          %467 = vmatpush1.msra.mxu0 %v427
          %468 = vmatprep.subr.mxu0 0.0
          %469 = vmatpush1.msra.mxu0 %v426
          %470 = vmatprep.subr.mxu0 0.0
          %471 = vmatpush1.msra.mxu0 %v425
          %472 = vmatprep.subr.mxu0 0.0
          %473 = vmatpush2.msra.mxu0 0.0
          %474 = vmatprep.subr.mxu0 0.0
          %475 = vmatpush2.msra.mxu0 0.0
          %476 = vmatprep.subr.mxu0 0.0
          %477 = vmatpush2.msra.mxu0 0.0
          %478 = vmatprep.subr.mxu0 0.0
          %479 = vmatpush2.msra.mxu0 0.0
          %480 = vmatprep.subr.mxu0 0.0
          %481 = vmatpush2.msra.mxu0 0.0
          %482 = vmatprep.subr.mxu0 0.0
          %483 = vmatpush2.msra.mxu0 0.0
          %484 = vmatprep.subr.mxu0 0.0
          %485 = vmatpush2.msra.mxu0 0.0
          %486 = vmatprep.subr.mxu0 0.0
          %487 = vmatpush2.msra.mxu0 0.0
          %488 = vmatprep.subr.mxu0 0.0
          %489 = vmatpush2.msra.mxu0 0.0
          %490 = vmatprep.subr.mxu0 0.0
          %491 = vmatpush2.msra.mxu0 0.0
          %492 = vmatprep.subr.mxu0 0.0
          %493 = vmatpush2.msra.mxu0 0.0
          %494 = vmatprep.subr.mxu0 0.0
          %495 = vmatpush2.msra.mxu0 0.0
          %496 = vmatprep.subr.mxu0 0.0
          %497 = vmatpush2.msra.mxu0 0.0
          %498 = vmatprep.subr.mxu0 0.0
          %499 = vmatpush2.msra.mxu0 0.0
          %500 = vmatprep.subr.mxu0 0.0
          %501 = vmatpush2.msra.mxu0 0.0
          %502 = vmatprep.subr.mxu0 0.0
          %503 = vmatpush2.msra.mxu0 0.0
          %504 = vmatprep.mubr.f32.mxu0 0.0
          %505 = vmatmul.mubr.f32.gmra.mxu0 %v438
          %v506 = vpop.f32.mrf.mxu0
          %v507 = vadd.f32 %v434, %v506
          %v508 = vpop.f32.mrf.mxu0
          %509 = vdwg.mxu0
          %v510 = vld [vmem:[#allocation10] sm:$0xff]
          %v511 = vld [vmem:[#allocation10 + $0x8] sm:$0xff]
          %v512 = vld [vmem:[#allocation10 + $0x10] sm:$0xff]
          %v513 = vld [vmem:[#allocation10 + $0x18] sm:$0xff]
          %v514 = vld [vmem:[%s6] sm:$0x1]
          %v516 = vlaneseq
          %v517 = vshrl.u32 %v516, 7
          %v518 = vsub.s32 0, %v517
          %v519 = vrot.slane %v514, %v518
          %521 = vmatprep.subr.mxu0 0.0
          %522 = vmatpush1.msra.mxu0 0.0
          %523 = vmatprep.subr.mxu0 0.0
          %524 = vmatpush1.msra.mxu0 0.0
          %525 = vmatprep.subr.mxu0 0.0
          %526 = vmatpush1.msra.mxu0 0.0
          %527 = vmatprep.subr.mxu0 0.0
          %528 = vmatpush1.msra.mxu0 0.0
          %529 = vmatprep.subr.mxu0 0.0
          %530 = vmatpush1.msra.mxu0 0.0
          %531 = vmatprep.subr.mxu0 0.0
          %532 = vmatpush1.msra.mxu0 0.0
          %533 = vmatprep.subr.mxu0 0.0
          %534 = vmatpush1.msra.mxu0 0.0
          %535 = vmatprep.subr.mxu0 0.0
          %536 = vmatpush1.msra.mxu0 0.0
          %537 = vmatprep.subr.mxu0 0.0
          %538 = vmatpush1.msra.mxu0 0.0
          %539 = vmatprep.subr.mxu0 0.0
          %540 = vmatpush1.msra.mxu0 0.0
          %541 = vmatprep.subr.mxu0 0.0
          %542 = vmatpush1.msra.mxu0 0.0
          %543 = vmatprep.subr.mxu0 0.0
          %544 = vmatpush1.msra.mxu0 0.0
          %545 = vmatprep.subr.mxu0 0.0
          %546 = vmatpush1.msra.mxu0 %v513
          %547 = vmatprep.subr.mxu0 0.0
          %548 = vmatpush1.msra.mxu0 %v512
          %549 = vmatprep.subr.mxu0 0.0
          %550 = vmatpush1.msra.mxu0 %v511
          %551 = vmatprep.subr.mxu0 0.0
          %552 = vmatpush1.msra.mxu0 %v510
          %553 = vmatprep.subr.mxu0 0.0
          %554 = vmatpush2.msra.mxu0 0.0
          %555 = vmatprep.subr.mxu0 0.0
          %556 = vmatpush2.msra.mxu0 0.0
          %557 = vmatprep.subr.mxu0 0.0
          %558 = vmatpush2.msra.mxu0 0.0
          %559 = vmatprep.subr.mxu0 0.0
          %560 = vmatpush2.msra.mxu0 0.0
          %561 = vmatprep.subr.mxu0 0.0
          %562 = vmatpush2.msra.mxu0 0.0
          %563 = vmatprep.subr.mxu0 0.0
          %564 = vmatpush2.msra.mxu0 0.0
          %565 = vmatprep.subr.mxu0 0.0
          %566 = vmatpush2.msra.mxu0 0.0
          %567 = vmatprep.subr.mxu0 0.0
          %568 = vmatpush2.msra.mxu0 0.0
          %569 = vmatprep.subr.mxu0 0.0
          %570 = vmatpush2.msra.mxu0 0.0
          %571 = vmatprep.subr.mxu0 0.0
          %572 = vmatpush2.msra.mxu0 0.0
          %573 = vmatprep.subr.mxu0 0.0
          %574 = vmatpush2.msra.mxu0 0.0
          %575 = vmatprep.subr.mxu0 0.0
          %576 = vmatpush2.msra.mxu0 0.0
          %577 = vmatprep.subr.mxu0 0.0
          %578 = vmatpush2.msra.mxu0 0.0
          %579 = vmatprep.subr.mxu0 0.0
          %580 = vmatpush2.msra.mxu0 0.0
          %581 = vmatprep.subr.mxu0 0.0
          %582 = vmatpush2.msra.mxu0 0.0
          %583 = vmatprep.subr.mxu0 0.0
          %584 = vmatpush2.msra.mxu0 0.0
          %585 = vmatprep.mubr.f32.mxu0 0.0
          %586 = vmatmul.mubr.f32.gmra.mxu0 %v438
          %v587 = vpop.f32.mrf.mxu0
          %v588 = vadd.f32 %v519, %v587
          %v589 = vpop.f32.mrf.mxu0
          %590 = vdwg.mxu0
          %591 = vst.msk [vmem:[#allocation2] sm:$0xff] %vm436, %v507
          %592 = vst.msk [vmem:[#allocation3] sm:$0xff] %vm436, %v588
        $region80: #{tpu_custom_call.1} parent=55 // pred_fallthru
          _
        %s593 = smul.u32 %s33, 8
        %s594 = scalar_lea.vmem %s369, %s593 [#allocation4]
        %v595 = vld [vmem:[%s594] sm:$0xff]
        %v596 = vld [vmem:[#allocation7] sm:$0xff]
        %v597 = vld [vmem:[#allocation7 + $0x8] sm:$0xff]
        %v598 = vld [vmem:[#allocation7 + $0x10] sm:$0xff]
        %v599 = vld [vmem:[#allocation7 + $0x18] sm:$0xff]
        %v600 = vld [vmem:[%s2] sm:$0x1]
        %v602 = vlaneseq
        %v603 = vshrl.u32 %v602, 7
        %v604 = vsub.s32 0, %v603
        %v605 = vrot.slane %v600, %v604
        %vm607 = vcmask 261120
        %v609 = vsel %vm607, %v595, 0
        %611 = vmatprep.subr.mxu0 0.0
        %612 = vmatpush1.msra.mxu0 0.0
        %613 = vmatprep.subr.mxu0 0.0
        %614 = vmatpush1.msra.mxu0 0.0
        %615 = vmatprep.subr.mxu0 0.0
        %616 = vmatpush1.msra.mxu0 0.0
        %617 = vmatprep.subr.mxu0 0.0
        %618 = vmatpush1.msra.mxu0 0.0
        %619 = vmatprep.subr.mxu0 0.0
        %620 = vmatpush1.msra.mxu0 0.0
        %621 = vmatprep.subr.mxu0 0.0
        %622 = vmatpush1.msra.mxu0 0.0
        %623 = vmatprep.subr.mxu0 0.0
        %624 = vmatpush1.msra.mxu0 0.0
        %625 = vmatprep.subr.mxu0 0.0
        %626 = vmatpush1.msra.mxu0 0.0
        %627 = vmatprep.subr.mxu0 0.0
        %628 = vmatpush1.msra.mxu0 0.0
        %629 = vmatprep.subr.mxu0 0.0
        %630 = vmatpush1.msra.mxu0 0.0
        %631 = vmatprep.subr.mxu0 0.0
        %632 = vmatpush1.msra.mxu0 0.0
        %633 = vmatprep.subr.mxu0 0.0
        %634 = vmatpush1.msra.mxu0 0.0
        %635 = vmatprep.subr.mxu0 0.0
        %636 = vmatpush1.msra.mxu0 %v599
        %637 = vmatprep.subr.mxu0 0.0
        %638 = vmatpush1.msra.mxu0 %v598
        %639 = vmatprep.subr.mxu0 0.0
        %640 = vmatpush1.msra.mxu0 %v597
        %641 = vmatprep.subr.mxu0 0.0
        %642 = vmatpush1.msra.mxu0 %v596
        %643 = vmatprep.subr.mxu0 0.0
        %644 = vmatpush2.msra.mxu0 0.0
        %645 = vmatprep.subr.mxu0 0.0
        %646 = vmatpush2.msra.mxu0 0.0
        %647 = vmatprep.subr.mxu0 0.0
        %648 = vmatpush2.msra.mxu0 0.0
        %649 = vmatprep.subr.mxu0 0.0
        %650 = vmatpush2.msra.mxu0 0.0
        %651 = vmatprep.subr.mxu0 0.0
        %652 = vmatpush2.msra.mxu0 0.0
        %653 = vmatprep.subr.mxu0 0.0
        %654 = vmatpush2.msra.mxu0 0.0
        %655 = vmatprep.subr.mxu0 0.0
        %656 = vmatpush2.msra.mxu0 0.0
        %657 = vmatprep.subr.mxu0 0.0
        %658 = vmatpush2.msra.mxu0 0.0
        %659 = vmatprep.subr.mxu0 0.0
        %660 = vmatpush2.msra.mxu0 0.0
        %661 = vmatprep.subr.mxu0 0.0
        %662 = vmatpush2.msra.mxu0 0.0
        %663 = vmatprep.subr.mxu0 0.0
        %664 = vmatpush2.msra.mxu0 0.0
        %665 = vmatprep.subr.mxu0 0.0
        %666 = vmatpush2.msra.mxu0 0.0
        %667 = vmatprep.subr.mxu0 0.0
        %668 = vmatpush2.msra.mxu0 0.0
        %669 = vmatprep.subr.mxu0 0.0
        %670 = vmatpush2.msra.mxu0 0.0
        %671 = vmatprep.subr.mxu0 0.0
        %672 = vmatpush2.msra.mxu0 0.0
        %673 = vmatprep.subr.mxu0 0.0
        %674 = vmatpush2.msra.mxu0 0.0
        %675 = vmatprep.mubr.f32.mxu0 0.0
        %676 = vmatmul.mubr.f32.gmra.mxu0 %v609
        %v677 = vpop.f32.mrf.mxu0
        %v678 = vadd.f32 %v605, %v677
        %v679 = vpop.f32.mrf.mxu0
        %680 = vdwg.mxu0
        %v681 = vmul.f32 %v678, 0.35355338
        %v682 = vld [vmem:[#allocation2] sm:$0xff]
        %v683 = vld [vmem:[#allocation3] sm:$0xff]
        %vm684 = vcmask 64512
        %v686 = vsel %vm684, %v681, 0
        %v689 = vsel %vm684, %v682, 0
        %691 = vmatprep.subr.mxu0 0.0
        %692 = vmatpush1.xpose.msra.mxu0 0.0
        %693 = vmatprep.subr.mxu0 0.0
        %694 = vmatpush1.xpose.msra.mxu0 0.0
        %695 = vmatprep.subr.mxu0 0.0
        %696 = vmatpush1.xpose.msra.mxu0 0.0
        %697 = vmatprep.subr.mxu0 0.0
        %698 = vmatpush1.xpose.msra.mxu0 0.0
        %699 = vmatprep.subr.mxu0 0.0
        %700 = vmatpush1.xpose.msra.mxu0 0.0
        %701 = vmatprep.subr.mxu0 0.0
        %702 = vmatpush1.xpose.msra.mxu0 0.0
        %703 = vmatprep.subr.mxu0 0.0
        %704 = vmatpush1.xpose.msra.mxu0 0.0
        %705 = vmatprep.subr.mxu0 0.0
        %706 = vmatpush1.xpose.msra.mxu0 0.0
        %707 = vmatprep.subr.mxu0 0.0
        %708 = vmatpush1.xpose.msra.mxu0 0.0
        %709 = vmatprep.subr.mxu0 0.0
        %710 = vmatpush1.xpose.msra.mxu0 0.0
        %711 = vmatprep.subr.mxu0 0.0
        %712 = vmatpush1.xpose.msra.mxu0 0.0
        %713 = vmatprep.subr.mxu0 0.0
        %714 = vmatpush1.xpose.msra.mxu0 0.0
        %715 = vmatprep.subr.mxu0 0.0
        %716 = vmatpush1.xpose.msra.mxu0 0.0
        %717 = vmatprep.subr.mxu0 0.0
        %718 = vmatpush1.xpose.msra.mxu0 0.0
        %719 = vmatprep.subr.mxu0 0.0
        %720 = vmatpush1.xpose.msra.mxu0 0.0
        %721 = vmatprep.subr.mxu0 0.0
        %722 = vmatpush1.xpose.msra.mxu0 %v689
        %723 = vmatprep.subr.mxu0 0.0
        %724 = vmatpush2.xpose.msra.mxu0 0.0
        %725 = vmatprep.subr.mxu0 0.0
        %726 = vmatpush2.xpose.msra.mxu0 0.0
        %727 = vmatprep.subr.mxu0 0.0
        %728 = vmatpush2.xpose.msra.mxu0 0.0
        %729 = vmatprep.subr.mxu0 0.0
        %730 = vmatpush2.xpose.msra.mxu0 0.0
        %731 = vmatprep.subr.mxu0 0.0
        %732 = vmatpush2.xpose.msra.mxu0 0.0
        %733 = vmatprep.subr.mxu0 0.0
        %734 = vmatpush2.xpose.msra.mxu0 0.0
        %735 = vmatprep.subr.mxu0 0.0
        %736 = vmatpush2.xpose.msra.mxu0 0.0
        %737 = vmatprep.subr.mxu0 0.0
        %738 = vmatpush2.xpose.msra.mxu0 0.0
        %739 = vmatprep.subr.mxu0 0.0
        %740 = vmatpush2.xpose.msra.mxu0 0.0
        %741 = vmatprep.subr.mxu0 0.0
        %742 = vmatpush2.xpose.msra.mxu0 0.0
        %743 = vmatprep.subr.mxu0 0.0
        %744 = vmatpush2.xpose.msra.mxu0 0.0
        %745 = vmatprep.subr.mxu0 0.0
        %746 = vmatpush2.xpose.msra.mxu0 0.0
        %747 = vmatprep.subr.mxu0 0.0
        %748 = vmatpush2.xpose.msra.mxu0 0.0
        %749 = vmatprep.subr.mxu0 0.0
        %750 = vmatpush2.xpose.msra.mxu0 0.0
        %751 = vmatprep.subr.mxu0 0.0
        %752 = vmatpush2.xpose.msra.mxu0 0.0
        %753 = vmatprep.subr.mxu0 0.0
        %754 = vmatpush2.xpose.msra.mxu0 0.0
        %755 = vmatprep.mubr.f32.mxu0 0.0
        %756 = vmatmul.mubr.f32.gmra.mxu0 %v686
        %v757 = vpop.f32.mrf.mxu0
        %v758 = vadd.f32 0.0, %v757
        %v759 = vpop.f32.mrf.mxu0
        %760 = vdwg.mxu0
        %v761 = vsel %vm684, %v758, -inf
        %762 = vmax.xlane.f32.xlu0 %v761
        %v763 = vpop.xlane.xlu0 %762
        %v764 = vsub.f32 %v758, %v763
        %v765 = vmul.f32 %v764, 1.442695
        %v766 = vpow.pop %v765
        %v767 = vsel %vm684, %v766, 0.0
        %768 = vadd.xlane.f32.xlu0 %v767
        %v769 = vpop.xlane.xlu0 %768
        %v771 = vsel %vm684, %v766, 0
        %773 = vmatprep.subr.mxu0 0.0
        %774 = vmatpush1.msra.mxu0 0.0
        %775 = vmatprep.subr.mxu0 0.0
        %776 = vmatpush1.msra.mxu0 0.0
        %777 = vmatprep.subr.mxu0 0.0
        %778 = vmatpush1.msra.mxu0 0.0
        %779 = vmatprep.subr.mxu0 0.0
        %780 = vmatpush1.msra.mxu0 0.0
        %781 = vmatprep.subr.mxu0 0.0
        %782 = vmatpush1.msra.mxu0 0.0
        %783 = vmatprep.subr.mxu0 0.0
        %784 = vmatpush1.msra.mxu0 0.0
        %785 = vmatprep.subr.mxu0 0.0
        %786 = vmatpush1.msra.mxu0 0.0
        %787 = vmatprep.subr.mxu0 0.0
        %788 = vmatpush1.msra.mxu0 0.0
        %789 = vmatprep.subr.mxu0 0.0
        %790 = vmatpush1.msra.mxu0 0.0
        %791 = vmatprep.subr.mxu0 0.0
        %792 = vmatpush1.msra.mxu0 0.0
        %793 = vmatprep.subr.mxu0 0.0
        %794 = vmatpush1.msra.mxu0 0.0
        %795 = vmatprep.subr.mxu0 0.0
        %796 = vmatpush1.msra.mxu0 0.0
        %797 = vmatprep.subr.mxu0 0.0
        %798 = vmatpush1.msra.mxu0 0.0
        %799 = vmatprep.subr.mxu0 0.0
        %800 = vmatpush1.msra.mxu0 0.0
        %801 = vmatprep.subr.mxu0 0.0
        %802 = vmatpush1.msra.mxu0 0.0
        %803 = vmatprep.subr.mxu0 0.0
        %804 = vmatpush1.msra.mxu0 %v683
        %805 = vmatprep.subr.mxu0 0.0
        %806 = vmatpush2.msra.mxu0 0.0
        %807 = vmatprep.subr.mxu0 0.0
        %808 = vmatpush2.msra.mxu0 0.0
        %809 = vmatprep.subr.mxu0 0.0
        %810 = vmatpush2.msra.mxu0 0.0
        %811 = vmatprep.subr.mxu0 0.0
        %812 = vmatpush2.msra.mxu0 0.0
        %813 = vmatprep.subr.mxu0 0.0
        %814 = vmatpush2.msra.mxu0 0.0
        %815 = vmatprep.subr.mxu0 0.0
        %816 = vmatpush2.msra.mxu0 0.0
        %817 = vmatprep.subr.mxu0 0.0
        %818 = vmatpush2.msra.mxu0 0.0
        %819 = vmatprep.subr.mxu0 0.0
        %820 = vmatpush2.msra.mxu0 0.0
        %821 = vmatprep.subr.mxu0 0.0
        %822 = vmatpush2.msra.mxu0 0.0
        %823 = vmatprep.subr.mxu0 0.0
        %824 = vmatpush2.msra.mxu0 0.0
        %825 = vmatprep.subr.mxu0 0.0
        %826 = vmatpush2.msra.mxu0 0.0
        %827 = vmatprep.subr.mxu0 0.0
        %828 = vmatpush2.msra.mxu0 0.0
        %829 = vmatprep.subr.mxu0 0.0
        %830 = vmatpush2.msra.mxu0 0.0
        %831 = vmatprep.subr.mxu0 0.0
        %832 = vmatpush2.msra.mxu0 0.0
        %833 = vmatprep.subr.mxu0 0.0
        %834 = vmatpush2.msra.mxu0 0.0
        %835 = vmatprep.subr.mxu0 0.0
        %836 = vmatpush2.msra.mxu0 0.0
        %837 = vmatprep.mubr.f32.mxu0 0.0
        %838 = vmatmul.mubr.f32.gmra.mxu0 %v771
        %v839 = vpop.f32.mrf.mxu0
        %v840 = vadd.f32 0.0, %v839
        %v841 = vpop.f32.mrf.mxu0
        %842 = vdwg.mxu0
        %v843 = vrcp.pop %v769
        %v844 = vmul.f32 %v840, %v843
        %845 = vrot.lane.b32.xlu0 %v681, 120
        %v846 = vpop.permute.xlu0 %845
        %847 = vrot.lane.b32.xlu0 %v682, 120
        %v848 = vpop.permute.xlu0 %847
        %v849 = vsel %vm684, %v846, 0
        %v851 = vsel %vm684, %v848, 0
        %853 = vmatprep.subr.mxu0 0.0
        %854 = vmatpush1.xpose.msra.mxu0 0.0
        %855 = vmatprep.subr.mxu0 0.0
        %856 = vmatpush1.xpose.msra.mxu0 0.0
        %857 = vmatprep.subr.mxu0 0.0
        %858 = vmatpush1.xpose.msra.mxu0 0.0
        %859 = vmatprep.subr.mxu0 0.0
        %860 = vmatpush1.xpose.msra.mxu0 0.0
        %861 = vmatprep.subr.mxu0 0.0
        %862 = vmatpush1.xpose.msra.mxu0 0.0
        %863 = vmatprep.subr.mxu0 0.0
        %864 = vmatpush1.xpose.msra.mxu0 0.0
        %865 = vmatprep.subr.mxu0 0.0
        %866 = vmatpush1.xpose.msra.mxu0 0.0
        %867 = vmatprep.subr.mxu0 0.0
        %868 = vmatpush1.xpose.msra.mxu0 0.0
        %869 = vmatprep.subr.mxu0 0.0
        %870 = vmatpush1.xpose.msra.mxu0 0.0
        %871 = vmatprep.subr.mxu0 0.0
        %872 = vmatpush1.xpose.msra.mxu0 0.0
        %873 = vmatprep.subr.mxu0 0.0
        %874 = vmatpush1.xpose.msra.mxu0 0.0
        %875 = vmatprep.subr.mxu0 0.0
        %876 = vmatpush1.xpose.msra.mxu0 0.0
        %877 = vmatprep.subr.mxu0 0.0
        %878 = vmatpush1.xpose.msra.mxu0 0.0
        %879 = vmatprep.subr.mxu0 0.0
        %880 = vmatpush1.xpose.msra.mxu0 0.0
        %881 = vmatprep.subr.mxu0 0.0
        %882 = vmatpush1.xpose.msra.mxu0 0.0
        %883 = vmatprep.subr.mxu0 0.0
        %884 = vmatpush1.xpose.msra.mxu0 %v851
        %885 = vmatprep.subr.mxu0 0.0
        %886 = vmatpush2.xpose.msra.mxu0 0.0
        %887 = vmatprep.subr.mxu0 0.0
        %888 = vmatpush2.xpose.msra.mxu0 0.0
        %889 = vmatprep.subr.mxu0 0.0
        %890 = vmatpush2.xpose.msra.mxu0 0.0
        %891 = vmatprep.subr.mxu0 0.0
        %892 = vmatpush2.xpose.msra.mxu0 0.0
        %893 = vmatprep.subr.mxu0 0.0
        %894 = vmatpush2.xpose.msra.mxu0 0.0
        %895 = vmatprep.subr.mxu0 0.0
        %896 = vmatpush2.xpose.msra.mxu0 0.0
        %897 = vmatprep.subr.mxu0 0.0
        %898 = vmatpush2.xpose.msra.mxu0 0.0
        %899 = vmatprep.subr.mxu0 0.0
        %900 = vmatpush2.xpose.msra.mxu0 0.0
        %901 = vmatprep.subr.mxu0 0.0
        %902 = vmatpush2.xpose.msra.mxu0 0.0
        %903 = vmatprep.subr.mxu0 0.0
        %904 = vmatpush2.xpose.msra.mxu0 0.0
        %905 = vmatprep.subr.mxu0 0.0
        %906 = vmatpush2.xpose.msra.mxu0 0.0
        %907 = vmatprep.subr.mxu0 0.0
        %908 = vmatpush2.xpose.msra.mxu0 0.0
        %909 = vmatprep.subr.mxu0 0.0
        %910 = vmatpush2.xpose.msra.mxu0 0.0
        %911 = vmatprep.subr.mxu0 0.0
        %912 = vmatpush2.xpose.msra.mxu0 0.0
        %913 = vmatprep.subr.mxu0 0.0
        %914 = vmatpush2.xpose.msra.mxu0 0.0
        %915 = vmatprep.subr.mxu0 0.0
        %916 = vmatpush2.xpose.msra.mxu0 0.0
        %917 = vmatprep.mubr.f32.mxu0 0.0
        %918 = vmatmul.mubr.f32.gmra.mxu0 %v849
        %v919 = vpop.f32.mrf.mxu0
        %v920 = vadd.f32 0.0, %v919
        %v921 = vpop.f32.mrf.mxu0
        %922 = vdwg.mxu0
        %v923 = vsel %vm684, %v920, -inf
        %924 = vmax.xlane.f32.xlu0 %v923
        %v925 = vpop.xlane.xlu0 %924
        %v926 = vsub.f32 %v920, %v925
        %v927 = vmul.f32 %v926, 1.442695
        %v928 = vpow.pop %v927
        %v929 = vsel %vm684, %v928, 0.0
        %930 = vadd.xlane.f32.xlu0 %v929
        %v931 = vpop.xlane.xlu0 %930
        %933 = vrot.lane.b32.xlu0 %v683, 120
        %v934 = vpop.permute.xlu0 %933
        %v937 = vsel %vm684, %v928, 0
        %939 = vmatprep.subr.mxu0 0.0
        %940 = vmatpush1.msra.mxu0 0.0
        %941 = vmatprep.subr.mxu0 0.0
        %942 = vmatpush1.msra.mxu0 0.0
        %943 = vmatprep.subr.mxu0 0.0
        %944 = vmatpush1.msra.mxu0 0.0
        %945 = vmatprep.subr.mxu0 0.0
        %946 = vmatpush1.msra.mxu0 0.0
        %947 = vmatprep.subr.mxu0 0.0
        %948 = vmatpush1.msra.mxu0 0.0
        %949 = vmatprep.subr.mxu0 0.0
        %950 = vmatpush1.msra.mxu0 0.0
        %951 = vmatprep.subr.mxu0 0.0
        %952 = vmatpush1.msra.mxu0 0.0
        %953 = vmatprep.subr.mxu0 0.0
        %954 = vmatpush1.msra.mxu0 0.0
        %955 = vmatprep.subr.mxu0 0.0
        %956 = vmatpush1.msra.mxu0 0.0
        %957 = vmatprep.subr.mxu0 0.0
        %958 = vmatpush1.msra.mxu0 0.0
        %959 = vmatprep.subr.mxu0 0.0
        %960 = vmatpush1.msra.mxu0 0.0
        %961 = vmatprep.subr.mxu0 0.0
        %962 = vmatpush1.msra.mxu0 0.0
        %963 = vmatprep.subr.mxu0 0.0
        %964 = vmatpush1.msra.mxu0 0.0
        %965 = vmatprep.subr.mxu0 0.0
        %966 = vmatpush1.msra.mxu0 0.0
        %967 = vmatprep.subr.mxu0 0.0
        %968 = vmatpush1.msra.mxu0 0.0
        %969 = vmatprep.subr.mxu0 0.0
        %970 = vmatpush1.msra.mxu0 %v934
        %971 = vmatprep.subr.mxu0 0.0
        %972 = vmatpush2.msra.mxu0 0.0
        %973 = vmatprep.subr.mxu0 0.0
        %974 = vmatpush2.msra.mxu0 0.0
        %975 = vmatprep.subr.mxu0 0.0
        %976 = vmatpush2.msra.mxu0 0.0
        %977 = vmatprep.subr.mxu0 0.0
        %978 = vmatpush2.msra.mxu0 0.0
        %979 = vmatprep.subr.mxu0 0.0
        %980 = vmatpush2.msra.mxu0 0.0
        %981 = vmatprep.subr.mxu0 0.0
        %982 = vmatpush2.msra.mxu0 0.0
        %983 = vmatprep.subr.mxu0 0.0
        %984 = vmatpush2.msra.mxu0 0.0
        %985 = vmatprep.subr.mxu0 0.0
        %986 = vmatpush2.msra.mxu0 0.0
        %987 = vmatprep.subr.mxu0 0.0
        %988 = vmatpush2.msra.mxu0 0.0
        %989 = vmatprep.subr.mxu0 0.0
        %990 = vmatpush2.msra.mxu0 0.0
        %991 = vmatprep.subr.mxu0 0.0
        %992 = vmatpush2.msra.mxu0 0.0
        %993 = vmatprep.subr.mxu0 0.0
        %994 = vmatpush2.msra.mxu0 0.0
        %995 = vmatprep.subr.mxu0 0.0
        %996 = vmatpush2.msra.mxu0 0.0
        %997 = vmatprep.subr.mxu0 0.0
        %998 = vmatpush2.msra.mxu0 0.0
        %999 = vmatprep.subr.mxu0 0.0
        %1000 = vmatpush2.msra.mxu0 0.0
        %1001 = vmatprep.subr.mxu0 0.0
        %1002 = vmatpush2.msra.mxu0 0.0
        %1003 = vmatprep.mubr.f32.mxu0 0.0
        %1004 = vmatmul.mubr.f32.gmra.mxu0 %v937
        %v1005 = vpop.f32.mrf.mxu0
        %v1006 = vadd.f32 0.0, %v1005
        %v1007 = vpop.f32.mrf.mxu0
        %1008 = vdwg.mxu0
        %v1009 = vrcp.pop %v931
        %v1010 = vmul.f32 %v1006, %v1009
        %1011 = vrot.lane.b32.xlu0 %v681, 112
        %v1012 = vpop.permute.xlu0 %1011
        %1013 = vrot.lane.b32.xlu0 %v682, 112
        %v1014 = vpop.permute.xlu0 %1013
        %v1015 = vsel %vm684, %v1012, 0
        %v1017 = vsel %vm684, %v1014, 0
        %1019 = vmatprep.subr.mxu0 0.0
        %1020 = vmatpush1.xpose.msra.mxu0 0.0
        %1021 = vmatprep.subr.mxu0 0.0
        %1022 = vmatpush1.xpose.msra.mxu0 0.0
        %1023 = vmatprep.subr.mxu0 0.0
        %1024 = vmatpush1.xpose.msra.mxu0 0.0
        %1025 = vmatprep.subr.mxu0 0.0
        %1026 = vmatpush1.xpose.msra.mxu0 0.0
        %1027 = vmatprep.subr.mxu0 0.0
        %1028 = vmatpush1.xpose.msra.mxu0 0.0
        %1029 = vmatprep.subr.mxu0 0.0
        %1030 = vmatpush1.xpose.msra.mxu0 0.0
        %1031 = vmatprep.subr.mxu0 0.0
        %1032 = vmatpush1.xpose.msra.mxu0 0.0
        %1033 = vmatprep.subr.mxu0 0.0
        %1034 = vmatpush1.xpose.msra.mxu0 0.0
        %1035 = vmatprep.subr.mxu0 0.0
        %1036 = vmatpush1.xpose.msra.mxu0 0.0
        %1037 = vmatprep.subr.mxu0 0.0
        %1038 = vmatpush1.xpose.msra.mxu0 0.0
        %1039 = vmatprep.subr.mxu0 0.0
        %1040 = vmatpush1.xpose.msra.mxu0 0.0
        %1041 = vmatprep.subr.mxu0 0.0
        %1042 = vmatpush1.xpose.msra.mxu0 0.0
        %1043 = vmatprep.subr.mxu0 0.0
        %1044 = vmatpush1.xpose.msra.mxu0 0.0
        %1045 = vmatprep.subr.mxu0 0.0
        %1046 = vmatpush1.xpose.msra.mxu0 0.0
        %1047 = vmatprep.subr.mxu0 0.0
        %1048 = vmatpush1.xpose.msra.mxu0 0.0
        %1049 = vmatprep.subr.mxu0 0.0
        %1050 = vmatpush1.xpose.msra.mxu0 %v1017
        %1051 = vmatprep.subr.mxu0 0.0
        %1052 = vmatpush2.xpose.msra.mxu0 0.0
        %1053 = vmatprep.subr.mxu0 0.0
        %1054 = vmatpush2.xpose.msra.mxu0 0.0
        %1055 = vmatprep.subr.mxu0 0.0
        %1056 = vmatpush2.xpose.msra.mxu0 0.0
        %1057 = vmatprep.subr.mxu0 0.0
        %1058 = vmatpush2.xpose.msra.mxu0 0.0
        %1059 = vmatprep.subr.mxu0 0.0
        %1060 = vmatpush2.xpose.msra.mxu0 0.0
        %1061 = vmatprep.subr.mxu0 0.0
        %1062 = vmatpush2.xpose.msra.mxu0 0.0
        %1063 = vmatprep.subr.mxu0 0.0
        %1064 = vmatpush2.xpose.msra.mxu0 0.0
        %1065 = vmatprep.subr.mxu0 0.0
        %1066 = vmatpush2.xpose.msra.mxu0 0.0
        %1067 = vmatprep.subr.mxu0 0.0
        %1068 = vmatpush2.xpose.msra.mxu0 0.0
        %1069 = vmatprep.subr.mxu0 0.0
        %1070 = vmatpush2.xpose.msra.mxu0 0.0
        %1071 = vmatprep.subr.mxu0 0.0
        %1072 = vmatpush2.xpose.msra.mxu0 0.0
        %1073 = vmatprep.subr.mxu0 0.0
        %1074 = vmatpush2.xpose.msra.mxu0 0.0
        %1075 = vmatprep.subr.mxu0 0.0
        %1076 = vmatpush2.xpose.msra.mxu0 0.0
        %1077 = vmatprep.subr.mxu0 0.0
        %1078 = vmatpush2.xpose.msra.mxu0 0.0
        %1079 = vmatprep.subr.mxu0 0.0
        %1080 = vmatpush2.xpose.msra.mxu0 0.0
        %1081 = vmatprep.subr.mxu0 0.0
        %1082 = vmatpush2.xpose.msra.mxu0 0.0
        %1083 = vmatprep.mubr.f32.mxu0 0.0
        %1084 = vmatmul.mubr.f32.gmra.mxu0 %v1015
        %v1085 = vpop.f32.mrf.mxu0
        %v1086 = vadd.f32 0.0, %v1085
        %v1087 = vpop.f32.mrf.mxu0
        %1088 = vdwg.mxu0
        %v1089 = vsel %vm684, %v1086, -inf
        %1090 = vmax.xlane.f32.xlu0 %v1089
        %v1091 = vpop.xlane.xlu0 %1090
        %v1092 = vsub.f32 %v1086, %v1091
        %v1093 = vmul.f32 %v1092, 1.442695
        %v1094 = vpow.pop %v1093
        %v1095 = vsel %vm684, %v1094, 0.0
        %1096 = vadd.xlane.f32.xlu0 %v1095
        %v1097 = vpop.xlane.xlu0 %1096
        %1098 = vrot.lane.b32.xlu0 %v683, 112
        %v1099 = vpop.permute.xlu0 %1098
        %v1102 = vsel %vm684, %v1094, 0
        %1104 = vmatprep.subr.mxu0 0.0
        %1105 = vmatpush1.msra.mxu0 0.0
        %1106 = vmatprep.subr.mxu0 0.0
        %1107 = vmatpush1.msra.mxu0 0.0
        %1108 = vmatprep.subr.mxu0 0.0
        %1109 = vmatpush1.msra.mxu0 0.0
        %1110 = vmatprep.subr.mxu0 0.0
        %1111 = vmatpush1.msra.mxu0 0.0
        %1112 = vmatprep.subr.mxu0 0.0
        %1113 = vmatpush1.msra.mxu0 0.0
        %1114 = vmatprep.subr.mxu0 0.0
        %1115 = vmatpush1.msra.mxu0 0.0
        %1116 = vmatprep.subr.mxu0 0.0
        %1117 = vmatpush1.msra.mxu0 0.0
        %1118 = vmatprep.subr.mxu0 0.0
        %1119 = vmatpush1.msra.mxu0 0.0
        %1120 = vmatprep.subr.mxu0 0.0
        %1121 = vmatpush1.msra.mxu0 0.0
        %1122 = vmatprep.subr.mxu0 0.0
        %1123 = vmatpush1.msra.mxu0 0.0
        %1124 = vmatprep.subr.mxu0 0.0
        %1125 = vmatpush1.msra.mxu0 0.0
        %1126 = vmatprep.subr.mxu0 0.0
        %1127 = vmatpush1.msra.mxu0 0.0
        %1128 = vmatprep.subr.mxu0 0.0
        %1129 = vmatpush1.msra.mxu0 0.0
        %1130 = vmatprep.subr.mxu0 0.0
        %1131 = vmatpush1.msra.mxu0 0.0
        %1132 = vmatprep.subr.mxu0 0.0
        %1133 = vmatpush1.msra.mxu0 0.0
        %1134 = vmatprep.subr.mxu0 0.0
        %1135 = vmatpush1.msra.mxu0 %v1099
        %1136 = vmatprep.subr.mxu0 0.0
        %1137 = vmatpush2.msra.mxu0 0.0
        %1138 = vmatprep.subr.mxu0 0.0
        %1139 = vmatpush2.msra.mxu0 0.0
        %1140 = vmatprep.subr.mxu0 0.0
        %1141 = vmatpush2.msra.mxu0 0.0
        %1142 = vmatprep.subr.mxu0 0.0
        %1143 = vmatpush2.msra.mxu0 0.0
        %1144 = vmatprep.subr.mxu0 0.0
        %1145 = vmatpush2.msra.mxu0 0.0
        %1146 = vmatprep.subr.mxu0 0.0
        %1147 = vmatpush2.msra.mxu0 0.0
        %1148 = vmatprep.subr.mxu0 0.0
        %1149 = vmatpush2.msra.mxu0 0.0
        %1150 = vmatprep.subr.mxu0 0.0
        %1151 = vmatpush2.msra.mxu0 0.0
        %1152 = vmatprep.subr.mxu0 0.0
        %1153 = vmatpush2.msra.mxu0 0.0
        %1154 = vmatprep.subr.mxu0 0.0
        %1155 = vmatpush2.msra.mxu0 0.0
        %1156 = vmatprep.subr.mxu0 0.0
        %1157 = vmatpush2.msra.mxu0 0.0
        %1158 = vmatprep.subr.mxu0 0.0
        %1159 = vmatpush2.msra.mxu0 0.0
        %1160 = vmatprep.subr.mxu0 0.0
        %1161 = vmatpush2.msra.mxu0 0.0
        %1162 = vmatprep.subr.mxu0 0.0
        %1163 = vmatpush2.msra.mxu0 0.0
        %1164 = vmatprep.subr.mxu0 0.0
        %1165 = vmatpush2.msra.mxu0 0.0
        %1166 = vmatprep.subr.mxu0 0.0
        %1167 = vmatpush2.msra.mxu0 0.0
        %1168 = vmatprep.mubr.f32.mxu0 0.0
        %1169 = vmatmul.mubr.f32.gmra.mxu0 %v1102
        %v1170 = vpop.f32.mrf.mxu0
        %v1171 = vadd.f32 0.0, %v1170
        %v1172 = vpop.f32.mrf.mxu0
        %1173 = vdwg.mxu0
        %v1174 = vrcp.pop %v1097
        %v1175 = vmul.f32 %v1171, %v1174
        %1176 = vrot.lane.b32.xlu0 %v681, 104
        %v1177 = vpop.permute.xlu0 %1176
        %1178 = vrot.lane.b32.xlu0 %v682, 104
        %v1179 = vpop.permute.xlu0 %1178
        %v1180 = vsel %vm684, %v1177, 0
        %v1182 = vsel %vm684, %v1179, 0
        %1184 = vmatprep.subr.mxu0 0.0
        %1185 = vmatpush1.xpose.msra.mxu0 0.0
        %1186 = vmatprep.subr.mxu0 0.0
        %1187 = vmatpush1.xpose.msra.mxu0 0.0
        %1188 = vmatprep.subr.mxu0 0.0
        %1189 = vmatpush1.xpose.msra.mxu0 0.0
        %1190 = vmatprep.subr.mxu0 0.0
        %1191 = vmatpush1.xpose.msra.mxu0 0.0
        %1192 = vmatprep.subr.mxu0 0.0
        %1193 = vmatpush1.xpose.msra.mxu0 0.0
        %1194 = vmatprep.subr.mxu0 0.0
        %1195 = vmatpush1.xpose.msra.mxu0 0.0
        %1196 = vmatprep.subr.mxu0 0.0
        %1197 = vmatpush1.xpose.msra.mxu0 0.0
        %1198 = vmatprep.subr.mxu0 0.0
        %1199 = vmatpush1.xpose.msra.mxu0 0.0
        %1200 = vmatprep.subr.mxu0 0.0
        %1201 = vmatpush1.xpose.msra.mxu0 0.0
        %1202 = vmatprep.subr.mxu0 0.0
        %1203 = vmatpush1.xpose.msra.mxu0 0.0
        %1204 = vmatprep.subr.mxu0 0.0
        %1205 = vmatpush1.xpose.msra.mxu0 0.0
        %1206 = vmatprep.subr.mxu0 0.0
        %1207 = vmatpush1.xpose.msra.mxu0 0.0
        %1208 = vmatprep.subr.mxu0 0.0
        %1209 = vmatpush1.xpose.msra.mxu0 0.0
        %1210 = vmatprep.subr.mxu0 0.0
        %1211 = vmatpush1.xpose.msra.mxu0 0.0
        %1212 = vmatprep.subr.mxu0 0.0
        %1213 = vmatpush1.xpose.msra.mxu0 0.0
        %1214 = vmatprep.subr.mxu0 0.0
        %1215 = vmatpush1.xpose.msra.mxu0 %v1182
        %1216 = vmatprep.subr.mxu0 0.0
        %1217 = vmatpush2.xpose.msra.mxu0 0.0
        %1218 = vmatprep.subr.mxu0 0.0
        %1219 = vmatpush2.xpose.msra.mxu0 0.0
        %1220 = vmatprep.subr.mxu0 0.0
        %1221 = vmatpush2.xpose.msra.mxu0 0.0
        %1222 = vmatprep.subr.mxu0 0.0
        %1223 = vmatpush2.xpose.msra.mxu0 0.0
        %1224 = vmatprep.subr.mxu0 0.0
        %1225 = vmatpush2.xpose.msra.mxu0 0.0
        %1226 = vmatprep.subr.mxu0 0.0
        %1227 = vmatpush2.xpose.msra.mxu0 0.0
        %1228 = vmatprep.subr.mxu0 0.0
        %1229 = vmatpush2.xpose.msra.mxu0 0.0
        %1230 = vmatprep.subr.mxu0 0.0
        %1231 = vmatpush2.xpose.msra.mxu0 0.0
        %1232 = vmatprep.subr.mxu0 0.0
        %1233 = vmatpush2.xpose.msra.mxu0 0.0
        %1234 = vmatprep.subr.mxu0 0.0
        %1235 = vmatpush2.xpose.msra.mxu0 0.0
        %1236 = vmatprep.subr.mxu0 0.0
        %1237 = vmatpush2.xpose.msra.mxu0 0.0
        %1238 = vmatprep.subr.mxu0 0.0
        %1239 = vmatpush2.xpose.msra.mxu0 0.0
        %1240 = vmatprep.subr.mxu0 0.0
        %1241 = vmatpush2.xpose.msra.mxu0 0.0
        %1242 = vmatprep.subr.mxu0 0.0
        %1243 = vmatpush2.xpose.msra.mxu0 0.0
        %1244 = vmatprep.subr.mxu0 0.0
        %1245 = vmatpush2.xpose.msra.mxu0 0.0
        %1246 = vmatprep.subr.mxu0 0.0
        %1247 = vmatpush2.xpose.msra.mxu0 0.0
        %1248 = vmatprep.mubr.f32.mxu0 0.0
        %1249 = vmatmul.mubr.f32.gmra.mxu0 %v1180
        %v1250 = vpop.f32.mrf.mxu0
        %v1251 = vadd.f32 0.0, %v1250
        %v1252 = vpop.f32.mrf.mxu0
        %1253 = vdwg.mxu0
        %v1254 = vsel %vm684, %v1251, -inf
        %1255 = vmax.xlane.f32.xlu0 %v1254
        %v1256 = vpop.xlane.xlu0 %1255
        %v1257 = vsub.f32 %v1251, %v1256
        %v1258 = vmul.f32 %v1257, 1.442695
        %v1259 = vpow.pop %v1258
        %v1260 = vsel %vm684, %v1259, 0.0
        %1261 = vadd.xlane.f32.xlu0 %v1260
        %v1262 = vpop.xlane.xlu0 %1261
        %1263 = vrot.lane.b32.xlu0 %v683, 104
        %v1264 = vpop.permute.xlu0 %1263
        %v1267 = vsel %vm684, %v1259, 0
        %1269 = vmatprep.subr.mxu0 0.0
        %1270 = vmatpush1.msra.mxu0 0.0
        %1271 = vmatprep.subr.mxu0 0.0
        %1272 = vmatpush1.msra.mxu0 0.0
        %1273 = vmatprep.subr.mxu0 0.0
        %1274 = vmatpush1.msra.mxu0 0.0
        %1275 = vmatprep.subr.mxu0 0.0
        %1276 = vmatpush1.msra.mxu0 0.0
        %1277 = vmatprep.subr.mxu0 0.0
        %1278 = vmatpush1.msra.mxu0 0.0
        %1279 = vmatprep.subr.mxu0 0.0
        %1280 = vmatpush1.msra.mxu0 0.0
        %1281 = vmatprep.subr.mxu0 0.0
        %1282 = vmatpush1.msra.mxu0 0.0
        %1283 = vmatprep.subr.mxu0 0.0
        %1284 = vmatpush1.msra.mxu0 0.0
        %1285 = vmatprep.subr.mxu0 0.0
        %1286 = vmatpush1.msra.mxu0 0.0
        %1287 = vmatprep.subr.mxu0 0.0
        %1288 = vmatpush1.msra.mxu0 0.0
        %1289 = vmatprep.subr.mxu0 0.0
        %1290 = vmatpush1.msra.mxu0 0.0
        %1291 = vmatprep.subr.mxu0 0.0
        %1292 = vmatpush1.msra.mxu0 0.0
        %1293 = vmatprep.subr.mxu0 0.0
        %1294 = vmatpush1.msra.mxu0 0.0
        %1295 = vmatprep.subr.mxu0 0.0
        %1296 = vmatpush1.msra.mxu0 0.0
        %1297 = vmatprep.subr.mxu0 0.0
        %1298 = vmatpush1.msra.mxu0 0.0
        %1299 = vmatprep.subr.mxu0 0.0
        %1300 = vmatpush1.msra.mxu0 %v1264
        %1301 = vmatprep.subr.mxu0 0.0
        %1302 = vmatpush2.msra.mxu0 0.0
        %1303 = vmatprep.subr.mxu0 0.0
        %1304 = vmatpush2.msra.mxu0 0.0
        %1305 = vmatprep.subr.mxu0 0.0
        %1306 = vmatpush2.msra.mxu0 0.0
        %1307 = vmatprep.subr.mxu0 0.0
        %1308 = vmatpush2.msra.mxu0 0.0
        %1309 = vmatprep.subr.mxu0 0.0
        %1310 = vmatpush2.msra.mxu0 0.0
        %1311 = vmatprep.subr.mxu0 0.0
        %1312 = vmatpush2.msra.mxu0 0.0
        %1313 = vmatprep.subr.mxu0 0.0
        %1314 = vmatpush2.msra.mxu0 0.0
        %1315 = vmatprep.subr.mxu0 0.0
        %1316 = vmatpush2.msra.mxu0 0.0
        %1317 = vmatprep.subr.mxu0 0.0
        %1318 = vmatpush2.msra.mxu0 0.0
        %1319 = vmatprep.subr.mxu0 0.0
        %1320 = vmatpush2.msra.mxu0 0.0
        %1321 = vmatprep.subr.mxu0 0.0
        %1322 = vmatpush2.msra.mxu0 0.0
        %1323 = vmatprep.subr.mxu0 0.0
        %1324 = vmatpush2.msra.mxu0 0.0
        %1325 = vmatprep.subr.mxu0 0.0
        %1326 = vmatpush2.msra.mxu0 0.0
        %1327 = vmatprep.subr.mxu0 0.0
        %1328 = vmatpush2.msra.mxu0 0.0
        %1329 = vmatprep.subr.mxu0 0.0
        %1330 = vmatpush2.msra.mxu0 0.0
        %1331 = vmatprep.subr.mxu0 0.0
        %1332 = vmatpush2.msra.mxu0 0.0
        %1333 = vmatprep.mubr.f32.mxu0 0.0
        %1334 = vmatmul.mubr.f32.gmra.mxu0 %v1267
        %v1335 = vpop.f32.mrf.mxu0
        %v1336 = vadd.f32 0.0, %v1335
        %v1337 = vpop.f32.mrf.mxu0
        %1338 = vdwg.mxu0
        %v1339 = vrcp.pop %v1262
        %v1340 = vmul.f32 %v1336, %v1339
        %1342 = vrot.lane.b32.xlu0 %v1010, 8
        %v1343 = vpop.permute.xlu0 %1342
        %1346 = vrot.lane.b32.xlu0 %v1175, 16
        %v1347 = vpop.permute.xlu0 %1346
        %1350 = vrot.lane.b32.xlu0 %v1340, 24
        %v1351 = vpop.permute.xlu0 %1350
        %v1353 = vsel %vm684, %v844, %v1343
        %vm1354 = vcmask 130048
        %v1355 = vsel %vm1354, %v1353, %v1347
        %vm1356 = vcmask 195584
        %v1357 = vsel %vm1356, %v1355, %v1351
        %v1358 = vld [vmem:[#allocation12] sm:$0xff]
        %v1359 = vld [vmem:[#allocation12 + $0x8] sm:$0xff]
        %v1360 = vld [vmem:[#allocation12 + $0x10] sm:$0xff]
        %v1361 = vld [vmem:[#allocation12 + $0x18] sm:$0xff]
        %v1362 = vld [vmem:[%s8] sm:$0x1]
        %v1364 = vlaneseq
        %v1365 = vshrl.u32 %v1364, 7
        %v1366 = vsub.s32 0, %v1365
        %v1367 = vrot.slane %v1362, %v1366
        %v1370 = vsel %vm607, %v1357, 0
        %1372 = vmatprep.subr.mxu0 0.0
        %1373 = vmatpush1.msra.mxu0 0.0
        %1374 = vmatprep.subr.mxu0 0.0
        %1375 = vmatpush1.msra.mxu0 0.0
        %1376 = vmatprep.subr.mxu0 0.0
        %1377 = vmatpush1.msra.mxu0 0.0
        %1378 = vmatprep.subr.mxu0 0.0
        %1379 = vmatpush1.msra.mxu0 0.0
        %1380 = vmatprep.subr.mxu0 0.0
        %1381 = vmatpush1.msra.mxu0 0.0
        %1382 = vmatprep.subr.mxu0 0.0
        %1383 = vmatpush1.msra.mxu0 0.0
        %1384 = vmatprep.subr.mxu0 0.0
        %1385 = vmatpush1.msra.mxu0 0.0
        %1386 = vmatprep.subr.mxu0 0.0
        %1387 = vmatpush1.msra.mxu0 0.0
        %1388 = vmatprep.subr.mxu0 0.0
        %1389 = vmatpush1.msra.mxu0 0.0
        %1390 = vmatprep.subr.mxu0 0.0
        %1391 = vmatpush1.msra.mxu0 0.0
        %1392 = vmatprep.subr.mxu0 0.0
        %1393 = vmatpush1.msra.mxu0 0.0
        %1394 = vmatprep.subr.mxu0 0.0
        %1395 = vmatpush1.msra.mxu0 0.0
        %1396 = vmatprep.subr.mxu0 0.0
        %1397 = vmatpush1.msra.mxu0 %v1361
        %1398 = vmatprep.subr.mxu0 0.0
        %1399 = vmatpush1.msra.mxu0 %v1360
        %1400 = vmatprep.subr.mxu0 0.0
        %1401 = vmatpush1.msra.mxu0 %v1359
        %1402 = vmatprep.subr.mxu0 0.0
        %1403 = vmatpush1.msra.mxu0 %v1358
        %1404 = vmatprep.subr.mxu0 0.0
        %1405 = vmatpush2.msra.mxu0 0.0
        %1406 = vmatprep.subr.mxu0 0.0
        %1407 = vmatpush2.msra.mxu0 0.0
        %1408 = vmatprep.subr.mxu0 0.0
        %1409 = vmatpush2.msra.mxu0 0.0
        %1410 = vmatprep.subr.mxu0 0.0
        %1411 = vmatpush2.msra.mxu0 0.0
        %1412 = vmatprep.subr.mxu0 0.0
        %1413 = vmatpush2.msra.mxu0 0.0
        %1414 = vmatprep.subr.mxu0 0.0
        %1415 = vmatpush2.msra.mxu0 0.0
        %1416 = vmatprep.subr.mxu0 0.0
        %1417 = vmatpush2.msra.mxu0 0.0
        %1418 = vmatprep.subr.mxu0 0.0
        %1419 = vmatpush2.msra.mxu0 0.0
        %1420 = vmatprep.subr.mxu0 0.0
        %1421 = vmatpush2.msra.mxu0 0.0
        %1422 = vmatprep.subr.mxu0 0.0
        %1423 = vmatpush2.msra.mxu0 0.0
        %1424 = vmatprep.subr.mxu0 0.0
        %1425 = vmatpush2.msra.mxu0 0.0
        %1426 = vmatprep.subr.mxu0 0.0
        %1427 = vmatpush2.msra.mxu0 0.0
        %1428 = vmatprep.subr.mxu0 0.0
        %1429 = vmatpush2.msra.mxu0 0.0
        %1430 = vmatprep.subr.mxu0 0.0
        %1431 = vmatpush2.msra.mxu0 0.0
        %1432 = vmatprep.subr.mxu0 0.0
        %1433 = vmatpush2.msra.mxu0 0.0
        %1434 = vmatprep.subr.mxu0 0.0
        %1435 = vmatpush2.msra.mxu0 0.0
        %1436 = vmatprep.mubr.f32.mxu0 0.0
        %1437 = vmatmul.mubr.f32.gmra.mxu0 %v1370
        %v1438 = vpop.f32.mrf.mxu0
        %v1439 = vadd.f32 %v1367, %v1438
        %v1440 = vpop.f32.mrf.mxu0
        %1441 = vdwg.mxu0
        %1442 = vst.msk [vmem:[%s419] sm:$0xff] %vm607, %v1439
        %s1443 = sand.u32 %s244, 1
        %s1444 = scalar_lea.sflag [#allocation6], %s1443
        %s1445 = sand.u32 %s244, 1
        %s1446 = smul.addr %s1445, 8
        %s1447 = scalar_lea.vmem [#allocation13], %s1446
        // Predicated region
        $region81: #{tpu_custom_call.1} parent=55 // pred_check
          %p1448 = pneg %p254
        $region82: #{tpu_custom_call.1} parent=55 // pred_check_branch
          %1450 = sbr.rel (%p1448) target = $region84
        $region83: #{tpu_custom_call.1} parent=55 // pred_region
          %s1452 = ssub.s32 128, 128
          %1453 = vsyncadd %s1444, %s1452
          %s1454 = sadd.s32 %s33, %s32
          %s1455 = smul.addr %s1454, 128
          %s1456 = scalar_lea.hbm %s9, %s1455
          %s1458 = sshll.u32 %s1447, 4
          %s1459 = int_to_ptr.vmem [resolvable:$true] %s1458
          %1461 = dma.vmem_to_hbm [thread:$0]  %s1459, 128, %s1456, %s1444
        $region84: #{tpu_custom_call.1} parent=55 // pred_fallthru
          _
      $region56: #{tpu_custom_call.1} parent=5 // pred_fallthru
        _
      %p1462 = scmp.le.s32.totalorder 2, %s23
      // Predicated region
      $region85: #{tpu_custom_call.1} parent=5 // pred_check
        %p1463 = pneg %p1462
      $region86: #{tpu_custom_call.1} parent=5 // pred_check_branch
        %1465 = sbr.rel (%p1463) target = $region88
      $region87: #{tpu_custom_call.1} parent=5 // pred_region
        %s1466 = ssub.s32 %s23, 2
        // Predicated region
        $region89: #{tpu_custom_call.1} parent=87 // pred_check
          %p1467 = pneg %p260
        $region90: #{tpu_custom_call.1} parent=87 // pred_check_branch
          %1469 = sbr.rel (%p1467) target = $region92
        $region91: #{tpu_custom_call.1} parent=87 // pred_region
          %s1470 = sand.u32 %s245, 1
          %s1471 = scalar_lea.sflag [#allocation6], %s1470
          %s1472 = sand.u32 %s245, 1
          %s1473 = smul.addr %s1472, 8
          %s1474 = scalar_lea.vmem [#allocation13], %s1473
          %1475 = dma.done %s1471, 128
        $region92: #{tpu_custom_call.1} parent=87 // pred_fallthru
          _
      $region88: #{tpu_custom_call.1} parent=5 // pred_fallthru
        _
    $region6: #{tpu_custom_call.1} parent=1 // loop_footer
      %s27 = sadd.s32 1, %s23
    $region7: #{tpu_custom_call.1} parent=1 // loop_footer_branch
      %22 = sbr.rel target = $region3
    $region8: #{tpu_custom_call.1} parent=1 // loop_exit
      _
    %1476 = vsyncpa [#allocation5], 1
    %s1477 = scalar_lea.sflag [#allocation5], 1
    %1478 = vsyncpa %s1477, 1
    %1479 = vsyncpa [#allocation8], 1
    %1480 = vsyncpa [#allocation11], 1
    %1481 = vsyncpa [#allocation6], 1
    %s1482 = scalar_lea.sflag [#allocation6], 1
    %1483 = vsyncpa %s1482, 1

</llo_original>
